<compile_context>
chip_gen: v6e
topology: v6e:2x2x1
jax: 0.10.0
libtpu: 0.0.40
codegen_flags: <defaults>
</compile_context>

<pallas_src>
import functools

import jax
import jax.numpy as jnp
from jax.experimental import pallas as pl
from jax.experimental.pallas import tpu as pltpu

# Scoped-VMEM budget: these kernels need only a few MiB; 32 MiB leaves
# double-buffering headroom even on v7x (64 MiB physical per TensorCore).
VMEM_LIMIT = 32 * 1024 * 1024


def _round_up(x, m):
    return ((x + m - 1) // m) * m


def _pick_tile(n, cap):
    for t in (1024, 512, 256, 128, 64, 32, 16, 8):
        if t <= cap and n % t == 0:
            return t
    return n  # full extent (always a legal block dim)


def _choose_tk(k):
    """Contraction tile: a single full-extent block when it fits (no zero
    padding of the operand); otherwise a 128-multiple divisor."""
    if k <= 2048:
        return k
    for t in (2048, 1024, 512, 256, 128):
        if k % t == 0:
            return t
    return k


# ----------------------------------------------------------------------------
# Kernel 1: tiled matmul + affine (folded BN or bias) + optional ReLU,
# multi-output (lane-dense 128-multiple widths):
#   y = relu( (X @ W) * scale + shift ) ; y split column-wise into outputs.
# bf16 operands, f32 VMEM scratch accumulator, K on the last ("arbitrary")
# grid axis.  Used for all 3x3 convs (via im2col) and the PAM q/k/v projection.
# ----------------------------------------------------------------------------
def _matmul_affine_kernel(x_ref, w_ref, scale_ref, shift_ref, *refs,
                          widths, relu):
    n_out = len(widths)
    o_refs = refs[:n_out]
    acc_ref = refs[n_out]

    @pl.when(pl.program_id(2) == 0)
    def _():
        acc_ref[...] = jnp.zeros(acc_ref.shape, acc_ref.dtype)

    acc_ref[...] += jnp.dot(x_ref[0], w_ref[...],
                            preferred_element_type=jnp.float32)

    @pl.when(pl.program_id(2) == pl.num_programs(2) - 1)
    def _():
        y = acc_ref[...] * scale_ref[...] + shift_ref[...]
        if relu:
            y = jnp.maximum(y, 0.0)
        off = 0
        for i, w in enumerate(widths):        # 128-aligned column slices
            o_refs[i][0] = y[:, off:off + w].astype(o_refs[i].dtype)
            off += w


def matmul_affine(x, w, scale, shift, *, out_widths, relu, out_dtype):
    """x:(B,M,K), w:(K,sum(widths)), scale/shift:(sum(widths),) ->
    tuple of (B,M,width) tensors.  Every width is a multiple of 128 so all
    output stores are lane-dense."""
    B, M, K = x.shape
    widths = tuple(int(v) for v in out_widths)
    total = sum(widths)
    assert w.shape == (K, total)

    tm = _pick_tile(M, 512)
    tk = _choose_tk(K)

    xb = x.astype(jnp.bfloat16)
    wb = w.astype(jnp.bfloat16)

    kernel = functools.partial(_matmul_affine_kernel, widths=widths, relu=relu)
    out_shape = tuple(jax.ShapeDtypeStruct((B, M, v), out_dtype) for v in widths)
    out_specs = tuple(pl.BlockSpec((1, tm, v), lambda b, m, k: (b, m, 0))
                      for v in widths)
    return pl.pallas_call(
        kernel,
        out_shape=out_shape,
        grid=(B, M // tm, K // tk),
        in_specs=[
            pl.BlockSpec((1, tm, tk), lambda b, m, k: (b, m, k)),
            pl.BlockSpec((tk, total), lambda b, m, k: (k, 0)),
            pl.BlockSpec((1, total), lambda b, m, k: (0, 0)),
            pl.BlockSpec((1, total), lambda b, m, k: (0, 0)),
        ],
        out_specs=out_specs,
        scratch_shapes=[pltpu.VMEM((tm, total), jnp.float32)],
        compiler_params=pltpu.CompilerParams(
            dimension_semantics=("parallel", "parallel", "arbitrary"),
            vmem_limit_bytes=VMEM_LIMIT),
    )(xb, wb,
      scale.reshape(1, total).astype(jnp.float32),
      shift.reshape(1, total).astype(jnp.float32))


def _im2col(x_bnc, H, W):
    """(B, H*W, Cin) -> (B, H*W, 9*Cin) patches for a 3x3 / pad=1 conv."""
    # TODO(synk): at real DANet sizes replace this materialized im2col with an
    # in-kernel 9-tap reduction over a padded input (~9x less conv HBM traffic).
    B, N, Cin = x_bnc.shape
    xi = x_bnc.reshape(B, H, W, Cin)
    xp = jnp.pad(xi, ((0, 0), (1, 1), (1, 1), (0, 0)))
    cols = [xp[:, dh:dh + H, dw:dw + W, :] for dh in range(3) for dw in range(3)]
    return jnp.concatenate(cols, axis=-1).reshape(B, H * W, 9 * Cin)


def conv3x3_bn_relu(x_bnc, H, W, w_hwio, scale, shift, *, c_out_pad, out_dtype):
    cin_x = x_bnc.shape[-1]
    kin, cout = w_hwio.shape[2], w_hwio.shape[3]
    w = w_hwio
    if kin != cin_x:  # activations carry zero-padded channels -> zero rows
        w = jnp.pad(w, ((0, 0), (0, 0), (0, cin_x - kin), (0, 0)))
    w = jnp.pad(w, ((0, 0), (0, 0), (0, 0), (0, c_out_pad - cout)))
    w = w.reshape(9 * cin_x, c_out_pad)
    scale_p = jnp.pad(scale, (0, c_out_pad - cout))
    shift_p = jnp.pad(shift, (0, c_out_pad - cout))
    return matmul_affine(_im2col(x_bnc, H, W), w, scale_p, shift_p,
                         out_widths=(c_out_pad,), relu=True,
                         out_dtype=out_dtype)[0]


# ----------------------------------------------------------------------------
# Kernel 2: PAM_Module — flash-attention style position attention.
#   q = xWq+bq ; k = xWk+bk ; v = xWv+bv ; out = gamma*softmax(qk^T)v + x
# q/k/v projection is a single multi-output matmul_affine (bf16 outputs,
# padded columns are exact zeros -> no effect on scores / output).
# ----------------------------------------------------------------------------
def _flash_pam_kernel(q_ref, k_ref, v_ref, x_ref, gamma_ref, o_ref,
                      m_ref, l_ref, acc_ref):
    ki = pl.program_id(2)

    @pl.when(ki == 0)
    def _():
        m_ref[...] = jnp.full(m_ref.shape, -jnp.inf, m_ref.dtype)
        l_ref[...] = jnp.zeros(l_ref.shape, l_ref.dtype)
        acc_ref[...] = jnp.zeros(acc_ref.shape, acc_ref.dtype)

    s = jax.lax.dot_general(q_ref[0], k_ref[0], (((1,), (1,)), ((), ())),
                            preferred_element_type=jnp.float32)     # (tq, tkv)
    m_prev = m_ref[...]
    m_new = jnp.maximum(m_prev, jnp.max(s, axis=-1, keepdims=True))
    alpha = jnp.exp(m_prev - m_new)
    p = jnp.exp(s - m_new)
    l_ref[...] = alpha * l_ref[...] + jnp.sum(p, axis=-1, keepdims=True)
    acc_ref[...] = alpha * acc_ref[...] + jnp.dot(
        p.astype(jnp.bfloat16), v_ref[0], preferred_element_type=jnp.float32)
    m_ref[...] = m_new

    @pl.when(ki == pl.num_programs(2) - 1)
    def _():
        inv_l = pl.reciprocal(l_ref[...], approx=True)
        o_ref[0] = (gamma_ref[0] * acc_ref[...] * inv_l
                    + x_ref[0].astype(jnp.float32)).astype(o_ref.dtype)


def pam_attention(feat, c_real, wq, bq, wk, bk, wv, bv, gamma):
    """feat: (B, N, Cp) bf16 (channels zero-padded to Cp); weights unpadded."""
    B, N, Cp = feat.shape
    Cq = wq.shape[-1]
    Cqp = _round_up(Cq, 128)
    pad_c = Cp - c_real

    wq_p = jnp.pad(wq, ((0, pad_c), (0, Cqp - Cq)))
    wk_p = jnp.pad(wk, ((0, pad_c), (0, Cqp - Cq)))
    wv_p = jnp.pad(wv, ((0, pad_c), (0, pad_c)))
    b_qkv = jnp.concatenate([jnp.pad(bq, (0, Cqp - Cq)),
                             jnp.pad(bk, (0, Cqp - Cq)),
                             jnp.pad(bv, (0, pad_c))])
    w_qkv = jnp.concatenate([wq_p, wk_p, wv_p], axis=1)     # (Cp, 2*Cqp + Cp)

    # Fused q/k/v projection: one pallas_call, three bf16 lane-dense outputs.
    q, k, v = matmul_affine(feat, w_qkv, jnp.ones_like(b_qkv), b_qkv,
                            out_widths=(Cqp, Cqp, Cp), relu=False,
                            out_dtype=jnp.bfloat16)

    # 256-tiles feed the 2x256^2 MXU on v6e/v7x; still fine on v5e.
    tq = _pick_tile(N, 256)
    tkv = _pick_tile(N, 256)
    return pl.pallas_call(
        _flash_pam_kernel,
        out_shape=jax.ShapeDtypeStruct((B, N, Cp), jnp.bfloat16),
        grid=(B, N // tq, N // tkv),
        in_specs=[
            pl.BlockSpec((1, tq, Cqp), lambda b, qi, ki: (b, qi, 0)),
            pl.BlockSpec((1, tkv, Cqp), lambda b, qi, ki: (b, ki, 0)),
            pl.BlockSpec((1, tkv, Cp), lambda b, qi, ki: (b, ki, 0)),
            pl.BlockSpec((1, tq, Cp), lambda b, qi, ki: (b, qi, 0)),
            pl.BlockSpec(memory_space=pltpu.MemorySpace.SMEM),
        ],
        out_specs=pl.BlockSpec((1, tq, Cp), lambda b, qi, ki: (b, qi, 0)),
        scratch_shapes=[pltpu.VMEM((tq, 1), jnp.float32),
                        pltpu.VMEM((tq, 1), jnp.float32),
                        pltpu.VMEM((tq, Cp), jnp.float32)],
        compiler_params=pltpu.CompilerParams(
            dimension_semantics=("parallel", "parallel", "arbitrary"),
            vmem_limit_bytes=VMEM_LIMIT),
    )(q, k, v, feat, gamma)


# ----------------------------------------------------------------------------
# Kernel 3a/3b: CAM_Module — channel attention, N-tiled.
#   energy = X^T X (reduced over N tiles into a (Cp,Cp) VMEM accumulator)
#   attn = softmax(max(energy) - energy) over the REAL channels (pad masked)
#   out  = gamma * (X attn^T) + X
# ----------------------------------------------------------------------------
def _cam_attn_kernel(x_ref, attn_ref, e_ref, *, c_real):
    ni = pl.program_id(1)

    @pl.when(ni == 0)
    def _():
        e_ref[...] = jnp.zeros(e_ref.shape, e_ref.dtype)

    xb = x_ref[0]                                             # (tn, Cp) bf16
    e_ref[...] += jax.lax.dot_general(xb, xb, (((0,), (0,)), ((), ())),
                                      preferred_element_type=jnp.float32)

    @pl.when(ni == pl.num_programs(1) - 1)
    def _():
        energy = e_ref[...]
        cp = energy.shape[0]
        col = jax.lax.broadcasted_iota(jnp.int32, (cp, cp), 1)
        row = jax.lax.broadcasted_iota(jnp.int32, (cp, cp), 0)
        valid = jnp.logical_and(col < c_real, row < c_real)
        neg = jnp.float32(-1e30)
        e_valid = jnp.where(valid, energy, neg)
        row_max = jnp.max(e_valid, axis=-1, keepdims=True)     # over real cols
        en = jnp.where(valid, row_max - energy, neg)
        en = en - jnp.max(en, axis=-1, keepdims=True)
        pexp = jnp.where(valid, jnp.exp(en), 0.0)
        denom = jnp.maximum(jnp.sum(pexp, axis=-1, keepdims=True), 1e-6)
        attn_ref[0] = (pexp * pl.reciprocal(denom, approx=True)
                       ).astype(attn_ref.dtype)


def _cam_apply_kernel(x_ref, attn_ref, gamma_ref, o_ref):
    x = x_ref[0]                                              # (tn, Cp) bf16
    out = jax.lax.dot_general(x, attn_ref[0], (((1,), (1,)), ((), ())),
                              preferred_element_type=jnp.float32)
    o_ref[0] = (gamma_ref[0] * out + x.astype(jnp.float32)).astype(o_ref.dtype)


def cam_attention(feat, gamma, c_real):
    """feat: (B, N, Cp) bf16 with zero-padded channels beyond c_real."""
    B, N, Cp = feat.shape
    tn_r = _pick_tile(N, 512)
    attn = pl.pallas_call(
        functools.partial(_cam_attn_kernel, c_real=c_real),
        out_shape=jax.ShapeDtypeStruct((B, Cp, Cp), jnp.bfloat16),
        grid=(B, N // tn_r),
        in_specs=[pl.BlockSpec((1, tn_r, Cp), lambda b, n: (b, n, 0))],
        out_specs=pl.BlockSpec((1, Cp, Cp), lambda b, n: (b, 0, 0)),
        scratch_shapes=[pltpu.VMEM((Cp, Cp), jnp.float32)],
        compiler_params=pltpu.CompilerParams(
            dimension_semantics=("parallel", "arbitrary"),
            vmem_limit_bytes=VMEM_LIMIT),
    )(feat)

    tn = _pick_tile(N, 512)
    return pl.pallas_call(
        _cam_apply_kernel,
        out_shape=jax.ShapeDtypeStruct((B, N, Cp), jnp.bfloat16),
        grid=(B, N // tn),
        in_specs=[
            pl.BlockSpec((1, tn, Cp), lambda b, n: (b, n, 0)),
            pl.BlockSpec((1, Cp, Cp), lambda b, n: (b, 0, 0)),
            pl.BlockSpec(memory_space=pltpu.MemorySpace.SMEM),
        ],
        out_specs=pl.BlockSpec((1, tn, Cp), lambda b, n: (b, n, 0)),
        compiler_params=pltpu.CompilerParams(
            dimension_semantics=("parallel", "parallel"),
            vmem_limit_bytes=VMEM_LIMIT),
    )(feat, attn, gamma)


# ----------------------------------------------------------------------------
# Full DABlock_ours forward (channels-last; output (B, H, W, Ci))
# ----------------------------------------------------------------------------
def dablock_forward(x_nchw, p):
    # TODO(synk): the return_atten_map=True branch of PAM_Module is not implemented.
    B, Cin, H, W = x_nchw.shape
    N = H * W
    Ci = p["conv5a_scale"].shape[0]
    Cp = _round_up(Ci, 128)      # channels carried lane-dense end-to-end

    x = jnp.transpose(x_nchw, (0, 2, 3, 1)).reshape(B, N, Cin)
    x = x.astype(jnp.bfloat16)

    # Fused conv5a + conv5c: one pallas_call, two lane-dense bf16 outputs.
    def pad_w(w):
        return jnp.pad(w, ((0, 0), (0, 0), (0, 0), (0, Cp - Ci))).reshape(-1, Cp)
    w_ab = jnp.concatenate([pad_w(p["conv5a_w"]), pad_w(p["conv5c_w"])], axis=1)
    scale_ab = jnp.concatenate([jnp.pad(p["conv5a_scale"], (0, Cp - Ci)),
                                jnp.pad(p["conv5c_scale"], (0, Cp - Ci))])
    shift_ab = jnp.concatenate([jnp.pad(p["conv5a_shift"], (0, Cp - Ci)),
                                jnp.pad(p["conv5c_shift"], (0, Cp - Ci))])
    feat1, feat2 = matmul_affine(_im2col(x, H, W), w_ab, scale_ab, shift_ab,
                                 out_widths=(Cp, Cp), relu=True,
                                 out_dtype=jnp.bfloat16)

    sa_feat = pam_attention(feat1, Ci, p["pam_wq"], p["pam_bq"], p["pam_wk"],
                            p["pam_bk"], p["pam_wv"], p["pam_bv"],
                            p["pam_gamma"])
    sa_conv = conv3x3_bn_relu(sa_feat, H, W, p["conv51_w"],
                              p["conv51_scale"], p["conv51_shift"],
                              c_out_pad=Cp, out_dtype=jnp.float32)

    sc_feat = cam_attention(feat2, p["cam_gamma"], Ci)
    sc_conv = conv3x3_bn_relu(sc_feat, H, W, p["conv52_w"],
                              p["conv52_scale"], p["conv52_shift"],
                              c_out_pad=Cp, out_dtype=jnp.float32)

    out = (sa_conv + sc_conv)[..., :Ci]          # slice pad off at the very end
    return out.reshape(B, H, W, Ci)


# ----------------------------------------------------------------------------
# References.
#  - "matched": same math & bf16/f32 casting structure -> tight check
#  - "f32": pure float32 reference of the original module -> reported max diff
# ----------------------------------------------------------------------------
def _ref_conv_matched(x_bnc, H, W, w_hwio, scale, shift, out_dtype):
    cin = x_bnc.shape[-1]
    cout = w_hwio.shape[-1]
    patches = _im2col(x_bnc, H, W).astype(jnp.bfloat16)
    wm = w_hwio.reshape(9 * cin, cout).astype(jnp.bfloat16)
    y = jnp.dot(patches, wm, preferred_element_type=jnp.float32)
    return jnp.maximum(y * scale + shift, 0.0).astype(out_dtype)


def _ref_pam_matched(feat, wq, bq, wk, bk, wv, bv, gamma):
    fb = feat.astype(jnp.bfloat16)

    def proj(w, b):
        return (jnp.dot(fb, w.astype(jnp.bfloat16),
                        preferred_element_type=jnp.float32) + b
                ).astype(jnp.bfloat16)

    q, k, v = proj(wq, bq), proj(wk, bk), proj(wv, bv)
    s = jnp.einsum("bnc,bmc->bnm", q, k, preferred_element_type=jnp.float32)
    attn = jax.nn.softmax(s, axis=-1)
    out = jnp.einsum("bnm,bmc->bnc", attn.astype(jnp.bfloat16), v,
                     preferred_element_type=jnp.float32)
    return (gamma[0] * out + fb.astype(jnp.float32)).astype(jnp.bfloat16)


def _ref_cam_matched(feat, gamma):
    fb = feat.astype(jnp.bfloat16)
    energy = jnp.einsum("bnc,bnd->bcd", fb, fb,
                        preferred_element_type=jnp.float32)
    en = jnp.max(energy, axis=-1, keepdims=True) - energy
    attn = jax.nn.softmax(en, axis=-1).astype(jnp.bfloat16)
    out = jnp.einsum("bnc,bdc->bnd", fb, attn,
                     preferred_element_type=jnp.float32)
    return (gamma[0] * out + fb.astype(jnp.float32)).astype(jnp.bfloat16)


def _ref_forward_matched(x_nchw, p):
    B, Cin, H, W = x_nchw.shape
    x = jnp.transpose(x_nchw, (0, 2, 3, 1)).reshape(B, H * W, Cin)
    feat1 = _ref_conv_matched(x, H, W, p["conv5a_w"], p["conv5a_scale"],
                              p["conv5a_shift"], jnp.bfloat16)
    feat2 = _ref_conv_matched(x, H, W, p["conv5c_w"], p["conv5c_scale"],
                              p["conv5c_shift"], jnp.bfloat16)
    Ci = feat1.shape[-1]
    sa = _ref_pam_matched(feat1, p["pam_wq"], p["pam_bq"], p["pam_wk"],
                          p["pam_bk"], p["pam_wv"], p["pam_bv"], p["pam_gamma"])
    sa = _ref_conv_matched(sa, H, W, p["conv51_w"], p["conv51_scale"],
                           p["conv51_shift"], jnp.float32)
    sc = _ref_cam_matched(feat2, p["cam_gamma"])
    sc = _ref_conv_matched(sc, H, W, p["conv52_w"], p["conv52_scale"],
                           p["conv52_shift"], jnp.float32)
    return (sa + sc).reshape(B, H, W, Ci)


def _ref_conv_f32(x, w, scale, shift):
    y = jax.lax.conv_general_dilated(
        x, w, (1, 1), "SAME", dimension_numbers=("NHWC", "HWIO", "NHWC"))
    return jnp.maximum(y * scale + shift, 0.0)


def _ref_forward_f32(x_nchw, p):
    x = jnp.transpose(x_nchw, (0, 2, 3, 1))
    B, H, W, _ = x.shape
    feat1 = _ref_conv_f32(x, p["conv5a_w"], p["conv5a_scale"], p["conv5a_shift"])
    feat2 = _ref_conv_f32(x, p["conv5c_w"], p["conv5c_scale"], p["conv5c_shift"])
    Ci = feat1.shape[-1]
    N = H * W
    f1 = feat1.reshape(B, N, Ci)
    q = f1 @ p["pam_wq"] + p["pam_bq"]
    k = f1 @ p["pam_wk"] + p["pam_bk"]
    v = f1 @ p["pam_wv"] + p["pam_bv"]
    attn = jax.nn.softmax(jnp.einsum("bnc,bmc->bnm", q, k), axis=-1)
    sa = (p["pam_gamma"][0] * jnp.einsum("bnm,bmc->bnc", attn, v) + f1
          ).reshape(B, H, W, Ci)
    sa = _ref_conv_f32(sa, p["conv51_w"], p["conv51_scale"], p["conv51_shift"])
    f2 = feat2.reshape(B, N, Ci)
    energy = jnp.einsum("bnc,bnd->bcd", f2, f2)
    en = jnp.max(energy, axis=-1, keepdims=True) - energy
    cattn = jax.nn.softmax(en, axis=-1)
    sc = (p["cam_gamma"][0] * jnp.einsum("bnc,bdc->bnd", f2, cattn) + f2
          ).reshape(B, H, W, Ci)
    sc = _ref_conv_f32(sc, p["conv52_w"], p["conv52_scale"], p["conv52_shift"])
    return sa + sc


# ----------------------------------------------------------------------------
# Deterministic parameter construction
# ----------------------------------------------------------------------------
def make_params(key, in_planes, inner_planes):
    ks = jax.random.split(key, 16)
    qdim = max(inner_planes // 8, 1)

    def conv_block(kw, ks_bn, cin, cout):
        w = jax.random.normal(kw, (3, 3, cin, cout), jnp.float32) * 0.05
        k1, k2, k3, k4 = jax.random.split(ks_bn, 4)
        bn_w = 1.0 + 0.1 * jax.random.normal(k1, (cout,), jnp.float32)
        bn_b = 0.1 * jax.random.normal(k2, (cout,), jnp.float32)
        mean = 0.1 * jax.random.normal(k3, (cout,), jnp.float32)
        var = jnp.abs(jax.random.normal(k4, (cout,), jnp.float32)) + 0.5
        scale = bn_w / jnp.sqrt(var + 1e-5)
        shift = bn_b - mean * scale
        return w, scale, shift

    p = {}
    p["conv5a_w"], p["conv5a_scale"], p["conv5a_shift"] = conv_block(ks[0], ks[1], in_planes, inner_planes)
    p["conv5c_w"], p["conv5c_scale"], p["conv5c_shift"] = conv_block(ks[2], ks[3], in_planes, inner_planes)
    p["conv51_w"], p["conv51_scale"], p["conv51_shift"] = conv_block(ks[4], ks[5], inner_planes, inner_planes)
    p["conv52_w"], p["conv52_scale"], p["conv52_shift"] = conv_block(ks[6], ks[7], inner_planes, inner_planes)
    p["pam_wq"] = jax.random.normal(ks[8], (inner_planes, qdim), jnp.float32) * 0.1
    p["pam_bq"] = 0.05 * jax.random.normal(ks[9], (qdim,), jnp.float32)
    p["pam_wk"] = jax.random.normal(ks[10], (inner_planes, qdim), jnp.float32) * 0.1
    p["pam_bk"] = 0.05 * jax.random.normal(ks[11], (qdim,), jnp.float32)
    p["pam_wv"] = jax.random.normal(ks[12], (inner_planes, inner_planes), jnp.float32) * 0.1
    p["pam_bv"] = 0.05 * jax.random.normal(ks[13], (inner_planes,), jnp.float32)
    # PyTorch inits gamma to 0 (identity residual); nonzero so the attention
    # paths are actually exercised by the test.
    p["pam_gamma"] = jnp.array([0.5], jnp.float32)
    p["cam_gamma"] = jnp.array([0.7], jnp.float32)
    return p


if __name__ == "__main__":
    B, in_planes, H, W = 2, 64, 16, 16
    inner_planes = in_planes // 4        # 16

    key = jax.random.PRNGKey(0)
    kx, kp = jax.random.split(key)
    x = jax.random.normal(kx, (B, in_planes, H, W), jnp.float32)   # NCHW like PyTorch
    params = make_params(kp, in_planes, inner_planes)

    out = jax.block_until_ready(dablock_forward(x, params))
    ref_m = jax.block_until_ready(_ref_forward_matched(x, params))
    ref_f = jax.block_until_ready(_ref_forward_f32(x, params))

    assert out.shape == (B, H, W, inner_planes)
    err_matched = float(jnp.max(jnp.abs(out - ref_m)))
    err_f32 = float(jnp.max(jnp.abs(out - ref_f)))
    # Tight check vs precision-matched (bf16-matmul / f32-accum) reference.
    assert jnp.allclose(out, ref_m, atol=3e-2, rtol=3e-2), err_matched
    # Informational: deviation vs pure-f32 reference (bf16 rounding of intermediates).
    print(f"max|pallas - matched_ref| = {err_matched:.3e}  "
          f"max|pallas - f32_ref| = {err_f32:.3e}")
    print("KERNEL_OK")
</pallas_src>

<mosaic_0001>
module attributes {stable_mosaic.version = 11 : i64} {
  func.func @_matmul_affine_kernel(%arg0: i32, %arg1: i32, %arg2: i32, %arg3: memref<1x256x576xbf16, #tpu.memory_space<vmem>>, %arg4: memref<576x256xbf16, #tpu.memory_space<vmem>>, %arg5: memref<1x256xf32, #tpu.memory_space<vmem>>, %arg6: memref<1x256xf32, #tpu.memory_space<vmem>>, %arg7: memref<1x256x128xbf16, #tpu.memory_space<vmem>>, %arg8: memref<1x256x128xbf16, #tpu.memory_space<vmem>>, %arg9: memref<256x256xf32, #tpu.memory_space<vmem>>) attributes {dimension_semantics = [#tpu.dimension_semantics<parallel>, #tpu.dimension_semantics<parallel>, #tpu.dimension_semantics<arbitrary>], iteration_bounds = array<i64: 2, 1, 1>, scalar_prefetch = 0 : i64, scratch_operands = 1 : i64, tpu.core_type = #tpu.core_type<tc>, window_params = [{transform_indices = @transform_0, window_bounds = array<i64: 1, 256, 576>}, {transform_indices = @transform_1, window_bounds = array<i64: 576, 256>}, {pipeline_mode = #tpu.pipeline_mode<synchronous>, transform_indices = @transform_2, window_bounds = array<i64: 1, 256>}, {pipeline_mode = #tpu.pipeline_mode<synchronous>, transform_indices = @transform_3, window_bounds = array<i64: 1, 256>}, {transform_indices = @transform_4, window_bounds = array<i64: 1, 256, 128>}, {transform_indices = @transform_5, window_bounds = array<i64: 1, 256, 128>}]} {
    %c0_i32 = arith.constant 0 : i32
    %0 = arith.cmpi eq, %arg2, %c0_i32 : i32
    %1 = arith.extui %0 : i1 to i32
    %c0_i32_0 = arith.constant 0 : i32
    %2 = arith.cmpi ne, %1, %c0_i32_0 : i32
    scf.if %2 {
      %cst_11 = arith.constant 0.000000e+00 : f32
      %13 = vector.broadcast %cst_11 : f32 to vector<256x256xf32>
      %c0_12 = arith.constant 0 : index
      %c0_13 = arith.constant 0 : index
      %14 = vector.load %arg9[%c0_12, %c0_13] : memref<256x256xf32, #tpu.memory_space<vmem>>, vector<256x256xf32>
      tpu.vector_store %arg9[%c0_12, %c0_13], %13 {strides = array<i32>} : memref<256x256xf32, #tpu.memory_space<vmem>>, vector<256x256xf32>,
    } else {
    }
    %c0 = arith.constant 0 : index
    %c0_1 = arith.constant 0 : index
    %3 = vector.load %arg9[%c0, %c0_1] : memref<256x256xf32, #tpu.memory_space<vmem>>, vector<256x256xf32>
    %c0_2 = arith.constant 0 : index
    %c0_3 = arith.constant 0 : index
    %c0_4 = arith.constant 0 : index
    %4 = vector.load %arg3[%c0_2, %c0_3, %c0_4] : memref<1x256x576xbf16, #tpu.memory_space<vmem>>, vector<1x256x576xbf16>
    %5 = vector.shape_cast %4 : vector<1x256x576xbf16> to vector<256x576xbf16>
    %c0_5 = arith.constant 0 : index
    %c0_6 = arith.constant 0 : index
    %6 = vector.load %arg4[%c0_5, %c0_6] : memref<576x256xbf16, #tpu.memory_space<vmem>>, vector<576x256xbf16>
    %cst = arith.constant dense<0.000000e+00> : vector<256x256xf32>
    %7 = tpu.matmul %5, %6, %cst {dimension_numbers = #tpu.dot_dimension_numbers<[1], [0], [0], [1], [0, 0, 1, 1], [], []>} : vector<256x576xbf16>, vector<576x256xbf16>, vector<256x256xf32> -> vector<256x256xf32>
    %8 = arith.addf %3, %7 : vector<256x256xf32>
    %c0_7 = arith.constant 0 : index
    %c0_8 = arith.constant 0 : index
    %9 = vector.load %arg9[%c0_7, %c0_8] : memref<256x256xf32, #tpu.memory_space<vmem>>, vector<256x256xf32>
    tpu.vector_store %arg9[%c0_7, %c0_8], %8 {strides = array<i32>} : memref<256x256xf32, #tpu.memory_space<vmem>>, vector<256x256xf32>,
    %c0_i32_9 = arith.constant 0 : i32
    %10 = arith.cmpi eq, %arg2, %c0_i32_9 : i32
    %11 = arith.extui %10 : i1 to i32
    %c0_i32_10 = arith.constant 0 : i32
    %12 = arith.cmpi ne, %11, %c0_i32_10 : i32
    scf.if %12 {
      %c0_11 = arith.constant 0 : index
      %c0_12 = arith.constant 0 : index
      %13 = vector.load %arg9[%c0_11, %c0_12] : memref<256x256xf32, #tpu.memory_space<vmem>>, vector<256x256xf32>
      %c0_13 = arith.constant 0 : index
      %c0_14 = arith.constant 0 : index
      %14 = vector.load %arg5[%c0_13, %c0_14] : memref<1x256xf32, #tpu.memory_space<vmem>>, vector<1x256xf32>
      %15 = vector.broadcast %14 : vector<1x256xf32> to vector<256x256xf32>
      %16 = arith.mulf %13, %15 : vector<256x256xf32>
      %c0_15 = arith.constant 0 : index
      %c0_16 = arith.constant 0 : index
      %17 = vector.load %arg6[%c0_15, %c0_16] : memref<1x256xf32, #tpu.memory_space<vmem>>, vector<1x256xf32>
      %18 = vector.broadcast %17 : vector<1x256xf32> to vector<256x256xf32>
      %19 = arith.addf %16, %18 : vector<256x256xf32>
      %cst_17 = arith.constant 0.000000e+00 : f32
      %20 = vector.broadcast %cst_17 : f32 to vector<256x256xf32>
      %21 = arith.maximumf %19, %20 : vector<256x256xf32>
      %22 = vector.extract_strided_slice %21 {offsets = [0, 0], sizes = [256, 128], strides = [1, 1]} : vector<256x256xf32> to vector<256x128xf32>
      %23 = arith.truncf %22 : vector<256x128xf32> to vector<256x128xbf16>
      %c0_18 = arith.constant 0 : index
      %c0_19 = arith.constant 0 : index
      %c0_20 = arith.constant 0 : index
      %24 = vector.load %arg7[%c0_18, %c0_19, %c0_20] : memref<1x256x128xbf16, #tpu.memory_space<vmem>>, vector<1x256x128xbf16>
      %25 = vector.shape_cast %24 : vector<1x256x128xbf16> to vector<256x128xbf16>
      %26 = vector.shape_cast %23 : vector<256x128xbf16> to vector<1x256x128xbf16>
      tpu.vector_store %arg7[%c0_18, %c0_19, %c0_20], %26 {strides = array<i32>} : memref<1x256x128xbf16, #tpu.memory_space<vmem>>, vector<1x256x128xbf16>,
      %27 = vector.extract_strided_slice %21 {offsets = [0, 128], sizes = [256, 128], strides = [1, 1]} : vector<256x256xf32> to vector<256x128xf32>
      %28 = arith.truncf %27 : vector<256x128xf32> to vector<256x128xbf16>
      %c0_21 = arith.constant 0 : index
      %c0_22 = arith.constant 0 : index
      %c0_23 = arith.constant 0 : index
      %29 = vector.load %arg8[%c0_21, %c0_22, %c0_23] : memref<1x256x128xbf16, #tpu.memory_space<vmem>>, vector<1x256x128xbf16>
      %30 = vector.shape_cast %29 : vector<1x256x128xbf16> to vector<256x128xbf16>
      %31 = vector.shape_cast %28 : vector<256x128xbf16> to vector<1x256x128xbf16>
      tpu.vector_store %arg8[%c0_21, %c0_22, %c0_23], %31 {strides = array<i32>} : memref<1x256x128xbf16, #tpu.memory_space<vmem>>, vector<1x256x128xbf16>,
    } else {
    }
    return
  }
  func.func @transform_0(%arg0: i32, %arg1: i32, %arg2: i32) -> (i32, i32, i32) {
    %c0_i32 = arith.constant 0 : i32
    return %arg0, %arg1, %arg2 : i32, i32, i32
  }
  func.func @transform_1(%arg0: i32, %arg1: i32, %arg2: i32) -> (i32, i32) {
    %c0_i32 = arith.constant 0 : i32
    %c0_i32_0 = arith.constant 0 : i32
    return %arg2, %c0_i32 : i32, i32
  }
  func.func @transform_2(%arg0: i32, %arg1: i32, %arg2: i32) -> (i32, i32) {
    %c0_i32 = arith.constant 0 : i32
    %c0_i32_0 = arith.constant 0 : i32
    %c0_i32_1 = arith.constant 0 : i32
    return %c0_i32, %c0_i32_0 : i32, i32
  }
  func.func @transform_3(%arg0: i32, %arg1: i32, %arg2: i32) -> (i32, i32) {
    %c0_i32 = arith.constant 0 : i32
    %c0_i32_0 = arith.constant 0 : i32
    %c0_i32_1 = arith.constant 0 : i32
    return %c0_i32, %c0_i32_0 : i32, i32
  }
  func.func @transform_4(%arg0: i32, %arg1: i32, %arg2: i32) -> (i32, i32, i32) {
    %c0_i32 = arith.constant 0 : i32
    %c0_i32_0 = arith.constant 0 : i32
    return %arg0, %arg1, %c0_i32 : i32, i32, i32
  }
  func.func @transform_5(%arg0: i32, %arg1: i32, %arg2: i32) -> (i32, i32, i32) {
    %c0_i32 = arith.constant 0 : i32
    %c0_i32_0 = arith.constant 0 : i32
    return %arg0, %arg1, %c0_i32 : i32, i32, i32
  }
}

</mosaic_0001>

<llo_original>
// kernel: tpu_custom_call.1
$region0: #{tpu_custom_call.1}
  #allocation0 [shape = 'u32[]', space=smem, size = 0x4, offset = 0x4, fixed_abs, tag = 'smem constant byte address 0x4 - core index']
  #allocation1 [shape = 'u32[144,128]{1,0:T(1,128)}', space=vmem, size = 0x12000, scoped, tag = 'internal scratch']
  #allocation2 [shape = 'f32[256,256]{1,0:T(8,128)}', space=vmem, size = 0x40000, scoped, tag = 'scratch operand']
  %s0 = inlined_call_operand.vmem [shape: bf16[2,256,576], index: 0, kind: input, shape index: {}]
  %s1 = inlined_call_operand.vmem [shape: bf16[576,256], index: 1, kind: input, shape index: {}]
  %s2 = inlined_call_operand.vmem [shape: f32[1,256], index: 2, kind: input, shape index: {}]
  %s3 = inlined_call_operand.vmem [shape: f32[1,256], index: 3, kind: input, shape index: {}]
  %s4 = inlined_call_operand.hbm [shape: bf16[2,256,128], index: 4, kind: output, shape index: {0}]
  %s5 = inlined_call_operand.hbm [shape: bf16[2,256,128], index: 5, kind: output, shape index: {1}]
  %6 = xla_tuple %s4, %s5
  %s7 = sld [smem:[#allocation0]]
  $region65: #{tpu_custom_call.1} parent=0
    _
  %s9 = ssub.s32 1, %s7
  %s10 = scalar_select 0, %s9, %s7
  $region1: #{tpu_custom_call.1} parent=0
    #allocation3 [shape = 'u8[131072]{0}', space=vmem, size = 0x20000, scoped, tag = 'output window, operand 0']
    #allocation4 [shape = 's32[2]{0}', space=sflag, size = 0x8, scoped, tag = 'scoped memory for tpu_custom_call.1']
    #allocation5 [shape = 'u8[131072]{0}', space=vmem, size = 0x20000, scoped, tag = 'output window, operand 1']
    #allocation6 [shape = 's32[2]{0}', space=sflag, size = 0x8, scoped, tag = 'scoped memory for tpu_custom_call.1']
    %11 = vsyncpa [#allocation4], 0
    %s12 = scalar_lea.sflag [#allocation4], 1
    %13 = vsyncpa %s12, 0
    %14 = vsyncpa [#allocation6], 0
    %s15 = scalar_lea.sflag [#allocation6], 1
    %16 = vsyncpa %s15, 0
    loop: start=0, step=1, limit=4
    $region2: #{tpu_custom_call.1} parent=1 // loop_pre_header
      _
    $region3: #{tpu_custom_call.1} parent=1 // loop_header
      %s18 = sphi 0, %s22
      %p19 = scmp.ge.s32.totalorder %s18, 4
      %s25 = sphi 0, %s44
      %s26 = sphi 0, %s40
      %s27 = sphi 0, %s36
      %s28 = sphi 0, %s25
      %s29 = sphi 0, %s26
      %s30 = sphi 0, %s27
      %s31 = sphi 0, %s28
      %s32 = sphi 0, %s29
      %s33 = sphi 0, %s30
      %s51 = sphi 0, %s53
      %s54 = sphi 0, %s51
      %s55 = sphi 0, %s54
      %s71 = sphi 0, %s55
      %s77 = sphi 0, %s79
      %s80 = sphi 0, %s77
      %s81 = sphi 0, %s80
      %s97 = sphi 0, %s81
      %s101 = sphi 0, %s101
      %s103 = sphi 0, %s101
      %s104 = sphi 0, %s103
      %s118 = sphi 0, %s104
      %s122 = sphi 0, %s122
      %s124 = sphi 0, %s122
      %s125 = sphi 0, %s124
      %s139 = sphi 0, %s125
      %s147 = sphi 0, %s149
      %s150 = sphi 0, %s147
      %s151 = sphi 0, %s150
      %s167 = sphi 0, %s151
      %s175 = sphi 0, %s177
      %s178 = sphi 0, %s175
      %s179 = sphi 0, %s178
      %s195 = sphi 0, %s179
    $region4: #{tpu_custom_call.1} parent=1 // loop_header_branch
      %21 = sbr.rel (%p19) target = $region8
    $region5: #{tpu_custom_call.1} parent=1 // loop_body
      %s23 = ssub.s32 %s18, 1
      %s24 = ssub.s32 %s18, 2
      %s34 = sadd.s32 1, %s27
      %p35 = scmp.ge.s32.totalorder %s34, 1
      %s36 = scalar_select %p35, 0, %s34
      %s37 = sadd.s32 1, %s26
      %s38 = scalar_select %p35, %s37, %s26
      %p39 = scmp.ge.s32.totalorder %s38, 1
      %s40 = scalar_select %p39, 0, %s38
      %s41 = sadd.s32 1, %s25
      %s42 = scalar_select %p39, %s41, %s25
      %p43 = scmp.ge.s32.totalorder %s42, 2
      %s44 = scalar_select %p43, 0, %s42
      %s45 = ssub.s32 %s25, %s44
      %s46 = ssub.s32 %s26, %s40
      %s47 = sor.u32 %s45, %s46
      %s48 = ssub.s32 %s27, %s36
      %s49 = sor.u32 %s47, %s48
      %p50 = scmp.eq.s32.totalorder %s49, 0
      %s52 = sadd.s32 %s51, 1
      %s53 = scalar_select %p50, %s51, %s52
      %p56 = pneg %p50
      %p57 = scmp.eq.s32.totalorder %s18, 1
      %p58 = por %p56, %p57
      %p59 = scmp.ne.s32.totalorder %s51, %s54
      %p60 = scmp.eq.s32.totalorder %s18, 0
      %p61 = por %p59, %p60
      %p62 = scmp.ne.s32.totalorder %s51, %s54
      %p63 = scmp.eq.s32.totalorder %s23, 1
      %p64 = por %p62, %p63
      %p65 = scmp.ne.s32.totalorder %s54, %s55
      %p66 = scmp.eq.s32.totalorder %s23, 0
      %p67 = por %p65, %p66
      %p68 = scmp.ne.s32.totalorder %s54, %s55
      %p69 = scmp.eq.s32.totalorder %s24, 1
      %p70 = por %p68, %p69
      %p72 = scmp.ne.s32.totalorder %s55, %s71
      %p73 = scmp.eq.s32.totalorder %s24, 0
      %p74 = por %p72, %p73
      %s75 = ssub.s32 %s27, %s36
      %p76 = scmp.eq.s32.totalorder %s75, 0
      %s78 = sadd.s32 %s77, 1
      %s79 = scalar_select %p76, %s77, %s78
      %p82 = pneg %p76
      %p83 = scmp.eq.s32.totalorder %s18, 1
      %p84 = por %p82, %p83
      %p85 = scmp.ne.s32.totalorder %s77, %s80
      %p86 = scmp.eq.s32.totalorder %s18, 0
      %p87 = por %p85, %p86
      %p88 = scmp.ne.s32.totalorder %s77, %s80
      %p89 = scmp.eq.s32.totalorder %s23, 1
      %p90 = por %p88, %p89
      %p91 = scmp.ne.s32.totalorder %s80, %s81
      %p92 = scmp.eq.s32.totalorder %s23, 0
      %p93 = por %p91, %p92
      %p94 = scmp.ne.s32.totalorder %s80, %s81
      %p95 = scmp.eq.s32.totalorder %s24, 1
      %p96 = por %p94, %p95
      %p98 = scmp.ne.s32.totalorder %s81, %s97
      %p99 = scmp.eq.s32.totalorder %s24, 0
      %p100 = por %p98, %p99
      %s102 = sadd.s32 %s101, 1
      %p105 = scmp.eq.s32.totalorder %s18, 1
      %p106 = scmp.ne.s32.totalorder %s101, %s103
      %p107 = scmp.eq.s32.totalorder %s18, 0
      %p108 = por %p106, %p107
      %p109 = scmp.ne.s32.totalorder %s101, %s103
      %p110 = scmp.eq.s32.totalorder %s23, 1
      %p111 = por %p109, %p110
      %p112 = scmp.ne.s32.totalorder %s103, %s104
      %p113 = scmp.eq.s32.totalorder %s23, 0
      %p114 = por %p112, %p113
      %p115 = scmp.ne.s32.totalorder %s103, %s104
      %p116 = scmp.eq.s32.totalorder %s24, 1
      %p117 = por %p115, %p116
      %p119 = scmp.ne.s32.totalorder %s104, %s118
      %p120 = scmp.eq.s32.totalorder %s24, 0
      %p121 = por %p119, %p120
      %s123 = sadd.s32 %s122, 1
      %p126 = scmp.eq.s32.totalorder %s18, 1
      %p127 = scmp.ne.s32.totalorder %s122, %s124
      %p128 = scmp.eq.s32.totalorder %s18, 0
      %p129 = por %p127, %p128
      %p130 = scmp.ne.s32.totalorder %s122, %s124
      %p131 = scmp.eq.s32.totalorder %s23, 1
      %p132 = por %p130, %p131
      %p133 = scmp.ne.s32.totalorder %s124, %s125
      %p134 = scmp.eq.s32.totalorder %s23, 0
      %p135 = por %p133, %p134
      %p136 = scmp.ne.s32.totalorder %s124, %s125
      %p137 = scmp.eq.s32.totalorder %s24, 1
      %p138 = por %p136, %p137
      %p140 = scmp.ne.s32.totalorder %s125, %s139
      %p141 = scmp.eq.s32.totalorder %s24, 0
      %p142 = por %p140, %p141
      %s143 = ssub.s32 %s25, %s44
      %s144 = ssub.s32 %s26, %s40
      %s145 = sor.u32 %s143, %s144
      %p146 = scmp.eq.s32.totalorder %s145, 0
      %s148 = sadd.s32 %s147, 1
      %s149 = scalar_select %p146, %s147, %s148
      %p152 = pneg %p146
      %p153 = scmp.eq.s32.totalorder %s18, 1
      %p154 = por %p152, %p153
      %p155 = scmp.ne.s32.totalorder %s147, %s150
      %p156 = scmp.eq.s32.totalorder %s18, 0
      %p157 = por %p155, %p156
      %p158 = scmp.ne.s32.totalorder %s147, %s150
      %p159 = scmp.eq.s32.totalorder %s23, 1
      %p160 = por %p158, %p159
      %p161 = scmp.ne.s32.totalorder %s150, %s151
      %p162 = scmp.eq.s32.totalorder %s23, 0
      %p163 = por %p161, %p162
      %p164 = scmp.ne.s32.totalorder %s150, %s151
      %p165 = scmp.eq.s32.totalorder %s24, 1
      %p166 = por %p164, %p165
      %p168 = scmp.ne.s32.totalorder %s151, %s167
      %p169 = scmp.eq.s32.totalorder %s24, 0
      %p170 = por %p168, %p169
      %s171 = ssub.s32 %s25, %s44
      %s172 = ssub.s32 %s26, %s40
      %s173 = sor.u32 %s171, %s172
      %p174 = scmp.eq.s32.totalorder %s173, 0
      %s176 = sadd.s32 %s175, 1
      %s177 = scalar_select %p174, %s175, %s176
      %p180 = pneg %p174
      %p181 = scmp.eq.s32.totalorder %s18, 1
      %p182 = por %p180, %p181
      %p183 = scmp.ne.s32.totalorder %s175, %s178
      %p184 = scmp.eq.s32.totalorder %s18, 0
      %p185 = por %p183, %p184
      %p186 = scmp.ne.s32.totalorder %s175, %s178
      %p187 = scmp.eq.s32.totalorder %s23, 1
      %p188 = por %p186, %p187
      %p189 = scmp.ne.s32.totalorder %s178, %s179
      %p190 = scmp.eq.s32.totalorder %s23, 0
      %p191 = por %p189, %p190
      %p192 = scmp.ne.s32.totalorder %s178, %s179
      %p193 = scmp.eq.s32.totalorder %s24, 1
      %p194 = por %p192, %p193
      %p196 = scmp.ne.s32.totalorder %s179, %s195
      %p197 = scmp.eq.s32.totalorder %s24, 0
      %p198 = por %p196, %p197
      %p199 = scmp.le.s32.totalorder 1, %s18
      %p200 = scmp.lt.s32.totalorder %s18, 3
      %p201 = pnand %p199, %p200
      %p202 = pneg %p201
      // Predicated region
      $region9: #{tpu_custom_call.1} parent=5 // pred_check
        _
      $region10: #{tpu_custom_call.1} parent=5 // pred_check_branch
        %204 = sbr.rel (%p201) target = $region12
      $region11: #{tpu_custom_call.1} parent=5 // pred_region
        %s205 = ssub.s32 %s18, 1
        // Predicated region
        $region13: #{tpu_custom_call.1} parent=11 // pred_check
          %p206 = pneg %p93
        $region14: #{tpu_custom_call.1} parent=11 // pred_check_branch
          %208 = sbr.rel (%p206) target = $region16
        $region15: #{tpu_custom_call.1} parent=11 // pred_region
          %s209 = smul.u32 72, %s30
          %p210 = scmp.lt.s32.totalorder %s209, 71
          %s211 = scalar_select %p210, %s209, 71
          %s212 = smul.addr %s211, 2
          %s213 = smul.addr %s212, 4
          %s214 = scalar_lea.vmem %s1, %s213
          %s215 = smul.u32 72, %s30
        $region16: #{tpu_custom_call.1} parent=11 // pred_fallthru
          _
        // Predicated region
        $region17: #{tpu_custom_call.1} parent=11 // pred_check
          %p216 = pneg %p114
        $region18: #{tpu_custom_call.1} parent=11 // pred_check_branch
          %218 = sbr.rel (%p216) target = $region20
        $region19: #{tpu_custom_call.1} parent=11 // pred_region
          _
        $region20: #{tpu_custom_call.1} parent=11 // pred_fallthru
          _
        // Predicated region
        $region21: #{tpu_custom_call.1} parent=11 // pred_check
          %p219 = pneg %p135
        $region22: #{tpu_custom_call.1} parent=11 // pred_check_branch
          %221 = sbr.rel (%p219) target = $region24
        $region23: #{tpu_custom_call.1} parent=11 // pred_region
          _
        $region24: #{tpu_custom_call.1} parent=11 // pred_fallthru
          _
      $region12: #{tpu_custom_call.1} parent=5 // pred_fallthru
        _
      %p222 = scmp.lt.s32.totalorder %s18, 2
      // Predicated region
      $region25: #{tpu_custom_call.1} parent=5 // pred_check
        %p223 = pneg %p222
      $region26: #{tpu_custom_call.1} parent=5 // pred_check_branch
        %225 = sbr.rel (%p223) target = $region28
      $region27: #{tpu_custom_call.1} parent=5 // pred_region
        // Predicated region
        $region29: #{tpu_custom_call.1} parent=27 // pred_check
          %p226 = pneg %p61
        $region30: #{tpu_custom_call.1} parent=27 // pred_check_branch
          %228 = sbr.rel (%p226) target = $region32
        $region31: #{tpu_custom_call.1} parent=27 // pred_region
          %s229 = smul.u32 32, %s26
          %s230 = smul.u32 5, %s27
          %p231 = scmp.lt.s32.totalorder %s25, 1
          %s232 = scalar_select %p231, %s25, 1
          %p233 = scmp.lt.s32.totalorder %s229, 31
          %s234 = scalar_select %p233, %s229, 31
          %p235 = scmp.lt.s32.totalorder %s230, 4
          %s236 = scalar_select %p235, %s230, 4
          %s237 = smul.addr %s234, 5
          %s238 = sadd.s32 %s236, %s237
          %s239 = smul.addr %s232, 160
          %s240 = sadd.s32 %s238, %s239
          %s241 = smul.addr %s240, 4
          %s242 = scalar_lea.vmem %s0, %s241
          %s243 = smul.u32 32, %s26
          %s244 = smul.u32 5, %s27
        $region32: #{tpu_custom_call.1} parent=27 // pred_fallthru
          _
      $region28: #{tpu_custom_call.1} parent=5 // pred_fallthru
        _
      %p245 = scmp.le.s32.totalorder 1, %s18
      %p246 = scmp.lt.s32.totalorder %s18, 3
      %p247 = pnand %p245, %p246
      %p248 = pneg %p247
      // Predicated region
      $region33: #{tpu_custom_call.1} parent=5 // pred_check
        _
      $region34: #{tpu_custom_call.1} parent=5 // pred_check_branch
        %250 = sbr.rel (%p247) target = $region36
      $region35: #{tpu_custom_call.1} parent=5 // pred_region
        %s251 = ssub.s32 %s18, 1
        %s252 = smul.u32 32, %s29
        %s253 = smul.u32 5, %s30
        %p254 = scmp.lt.s32.totalorder %s28, 1
        %s255 = scalar_select %p254, %s28, 1
        %p256 = scmp.lt.s32.totalorder %s252, 31
        %s257 = scalar_select %p256, %s252, 31
        %p258 = scmp.lt.s32.totalorder %s253, 4
        %s259 = scalar_select %p258, %s253, 4
        %s260 = smul.addr %s257, 5
        %s261 = sadd.s32 %s259, %s260
        %s262 = smul.addr %s255, 160
        %s263 = sadd.s32 %s261, %s262
        %s264 = smul.addr %s263, 4
        %s265 = scalar_lea.vmem %s0, %s264
        %p266 = pneg %p67
        %p267 = pneg %p64
        %s268 = smul.u32 72, %s30
        %p269 = scmp.lt.s32.totalorder %s268, 71
        %s270 = scalar_select %p269, %s268, 71
        %s271 = smul.addr %s270, 2
        %s272 = smul.addr %s271, 4
        %s273 = scalar_lea.vmem %s1, %s272
        %p274 = pneg %p93
        %p275 = pneg %p90
        %p276 = pneg %p114
        %p277 = pneg %p111
        %p278 = pneg %p135
        %p279 = pneg %p132
        %p280 = pneg %p163
        %p281 = pneg %p160
        %s282 = sand.u32 %s150, 1
        %s283 = scalar_lea.sflag [#allocation4], %s282
        %s284 = sand.u32 %s150, 1
        %s285 = smul.addr %s284, 128
        %s286 = scalar_lea.vmem [#allocation3], %s285
        %p287 = pneg %p191
        %p288 = pneg %p188
        %s289 = sand.u32 %s178, 1
        %s290 = scalar_lea.sflag [#allocation6], %s289
        %s291 = sand.u32 %s178, 1
        %s292 = smul.addr %s291, 128
        %s293 = scalar_lea.vmem [#allocation5], %s292
        %s294 = smul.u32 32, %s29
        %s295 = smul.u32 5, %s30
        %p296 = scmp.lt.s32.totalorder %s28, 1
        %s297 = scalar_select %p296, %s28, 1
        %p298 = scmp.lt.s32.totalorder %s294, 31
        %s299 = scalar_select %p298, %s294, 31
        %p300 = scmp.lt.s32.totalorder %s295, 4
        %s301 = scalar_select %p300, %s295, 4
        %s302 = smul.addr %s299, 5
        %s303 = sadd.s32 %s301, %s302
        %s304 = smul.addr %s297, 160
        %s305 = sadd.s32 %s303, %s304
        %s306 = smul.addr %s305, 4
        %s307 = scalar_lea.vmem %s0, %s306
        %s308 = smul.u32 32, %s29
        %s309 = smul.u32 5, %s30
        %s310 = smul.u32 72, %s30
        %p311 = scmp.lt.s32.totalorder %s310, 71
        %s312 = scalar_select %p311, %s310, 71
        %s313 = smul.addr %s312, 2
        %s314 = smul.addr %s313, 4
        %s315 = scalar_lea.vmem %s1, %s314
        %s316 = smul.u32 72, %s30
        %s317 = smul.u32 32, %s29
        %s318 = smul.u32 32, %s29
        %p320 = scmp.eq.s32.totalorder %s30, 0
        // Predicated region
        $region37: #{tpu_custom_call.1} parent=35 // pred_check
          %p321 = pneg %p320
        $region38: #{tpu_custom_call.1} parent=35 // pred_check_branch
          %323 = sbr.rel (%p321) target = $region40
        $region39: #{tpu_custom_call.1} parent=35 // pred_region
          %324 = vst [vmem:[#allocation2] sm:$0xff] 0.0
          %325 = vst [vmem:[#allocation2 + $0x8] sm:$0xff] 0.0
          %326 = vst [vmem:[#allocation2 + $0x10] sm:$0xff] 0.0
          %327 = vst [vmem:[#allocation2 + $0x18] sm:$0xff] 0.0
          %328 = vst [vmem:[#allocation2 + $0x20] sm:$0xff] 0.0
          %329 = vst [vmem:[#allocation2 + $0x28] sm:$0xff] 0.0
          %330 = vst [vmem:[#allocation2 + $0x30] sm:$0xff] 0.0
          %331 = vst [vmem:[#allocation2 + $0x38] sm:$0xff] 0.0
          %332 = vst [vmem:[#allocation2 + $0x40] sm:$0xff] 0.0
          %333 = vst [vmem:[#allocation2 + $0x48] sm:$0xff] 0.0
          %334 = vst [vmem:[#allocation2 + $0x50] sm:$0xff] 0.0
          %335 = vst [vmem:[#allocation2 + $0x58] sm:$0xff] 0.0
          %336 = vst [vmem:[#allocation2 + $0x60] sm:$0xff] 0.0
          %337 = vst [vmem:[#allocation2 + $0x68] sm:$0xff] 0.0
          %338 = vst [vmem:[#allocation2 + $0x70] sm:$0xff] 0.0
          %339 = vst [vmem:[#allocation2 + $0x78] sm:$0xff] 0.0
          %340 = vst [vmem:[#allocation2 + $0x80] sm:$0xff] 0.0
          %341 = vst [vmem:[#allocation2 + $0x88] sm:$0xff] 0.0
          %342 = vst [vmem:[#allocation2 + $0x90] sm:$0xff] 0.0
          %343 = vst [vmem:[#allocation2 + $0x98] sm:$0xff] 0.0
          %344 = vst [vmem:[#allocation2 + $0xa0] sm:$0xff] 0.0
          %345 = vst [vmem:[#allocation2 + $0xa8] sm:$0xff] 0.0
          %346 = vst [vmem:[#allocation2 + $0xb0] sm:$0xff] 0.0
          %347 = vst [vmem:[#allocation2 + $0xb8] sm:$0xff] 0.0
          %348 = vst [vmem:[#allocation2 + $0xc0] sm:$0xff] 0.0
          %349 = vst [vmem:[#allocation2 + $0xc8] sm:$0xff] 0.0
          %350 = vst [vmem:[#allocation2 + $0xd0] sm:$0xff] 0.0
          %351 = vst [vmem:[#allocation2 + $0xd8] sm:$0xff] 0.0
          %352 = vst [vmem:[#allocation2 + $0xe0] sm:$0xff] 0.0
          %353 = vst [vmem:[#allocation2 + $0xe8] sm:$0xff] 0.0
          %354 = vst [vmem:[#allocation2 + $0xf0] sm:$0xff] 0.0
          %355 = vst [vmem:[#allocation2 + $0xf8] sm:$0xff] 0.0
          %356 = vst [vmem:[#allocation2 + $0x100] sm:$0xff] 0.0
          %357 = vst [vmem:[#allocation2 + $0x108] sm:$0xff] 0.0
          %358 = vst [vmem:[#allocation2 + $0x110] sm:$0xff] 0.0
          %359 = vst [vmem:[#allocation2 + $0x118] sm:$0xff] 0.0
          %360 = vst [vmem:[#allocation2 + $0x120] sm:$0xff] 0.0
          %361 = vst [vmem:[#allocation2 + $0x128] sm:$0xff] 0.0
          %362 = vst [vmem:[#allocation2 + $0x130] sm:$0xff] 0.0
          %363 = vst [vmem:[#allocation2 + $0x138] sm:$0xff] 0.0
          %364 = vst [vmem:[#allocation2 + $0x140] sm:$0xff] 0.0
          %365 = vst [vmem:[#allocation2 + $0x148] sm:$0xff] 0.0
          %366 = vst [vmem:[#allocation2 + $0x150] sm:$0xff] 0.0
          %367 = vst [vmem:[#allocation2 + $0x158] sm:$0xff] 0.0
          %368 = vst [vmem:[#allocation2 + $0x160] sm:$0xff] 0.0
          %369 = vst [vmem:[#allocation2 + $0x168] sm:$0xff] 0.0
          %370 = vst [vmem:[#allocation2 + $0x170] sm:$0xff] 0.0
          %371 = vst [vmem:[#allocation2 + $0x178] sm:$0xff] 0.0
          %372 = vst [vmem:[#allocation2 + $0x180] sm:$0xff] 0.0
          %373 = vst [vmem:[#allocation2 + $0x188] sm:$0xff] 0.0
          %374 = vst [vmem:[#allocation2 + $0x190] sm:$0xff] 0.0
          %375 = vst [vmem:[#allocation2 + $0x198] sm:$0xff] 0.0
          %376 = vst [vmem:[#allocation2 + $0x1a0] sm:$0xff] 0.0
          %377 = vst [vmem:[#allocation2 + $0x1a8] sm:$0xff] 0.0
          %378 = vst [vmem:[#allocation2 + $0x1b0] sm:$0xff] 0.0
          %379 = vst [vmem:[#allocation2 + $0x1b8] sm:$0xff] 0.0
          %380 = vst [vmem:[#allocation2 + $0x1c0] sm:$0xff] 0.0
          %381 = vst [vmem:[#allocation2 + $0x1c8] sm:$0xff] 0.0
          %382 = vst [vmem:[#allocation2 + $0x1d0] sm:$0xff] 0.0
          %383 = vst [vmem:[#allocation2 + $0x1d8] sm:$0xff] 0.0
          %384 = vst [vmem:[#allocation2 + $0x1e0] sm:$0xff] 0.0
          %385 = vst [vmem:[#allocation2 + $0x1e8] sm:$0xff] 0.0
          %386 = vst [vmem:[#allocation2 + $0x1f0] sm:$0xff] 0.0
          %387 = vst [vmem:[#allocation2 + $0x1f8] sm:$0xff] 0.0
        $region40: #{tpu_custom_call.1} parent=35 // pred_fallthru
          _
        %v388 = vld [vmem:[#allocation2] sm:$0xff]
        %v389 = vld [vmem:[#allocation2 + $0x8] sm:$0xff]
        %v390 = vld [vmem:[#allocation2 + $0x10] sm:$0xff]
        %v391 = vld [vmem:[#allocation2 + $0x18] sm:$0xff]
        %v392 = vld [vmem:[#allocation2 + $0x20] sm:$0xff]
        %v393 = vld [vmem:[#allocation2 + $0x28] sm:$0xff]
        %v394 = vld [vmem:[#allocation2 + $0x30] sm:$0xff]
        %v395 = vld [vmem:[#allocation2 + $0x38] sm:$0xff]
        %v396 = vld [vmem:[#allocation2 + $0x40] sm:$0xff]
        %v397 = vld [vmem:[#allocation2 + $0x48] sm:$0xff]
        %v398 = vld [vmem:[#allocation2 + $0x50] sm:$0xff]
        %v399 = vld [vmem:[#allocation2 + $0x58] sm:$0xff]
        %v400 = vld [vmem:[#allocation2 + $0x60] sm:$0xff]
        %v401 = vld [vmem:[#allocation2 + $0x68] sm:$0xff]
        %v402 = vld [vmem:[#allocation2 + $0x70] sm:$0xff]
        %v403 = vld [vmem:[#allocation2 + $0x78] sm:$0xff]
        %v404 = vld [vmem:[#allocation2 + $0x80] sm:$0xff]
        %v405 = vld [vmem:[#allocation2 + $0x88] sm:$0xff]
        %v406 = vld [vmem:[#allocation2 + $0x90] sm:$0xff]
        %v407 = vld [vmem:[#allocation2 + $0x98] sm:$0xff]
        %v408 = vld [vmem:[#allocation2 + $0xa0] sm:$0xff]
        %v409 = vld [vmem:[#allocation2 + $0xa8] sm:$0xff]
        %v410 = vld [vmem:[#allocation2 + $0xb0] sm:$0xff]
        %v411 = vld [vmem:[#allocation2 + $0xb8] sm:$0xff]
        %v412 = vld [vmem:[#allocation2 + $0xc0] sm:$0xff]
        %v413 = vld [vmem:[#allocation2 + $0xc8] sm:$0xff]
        %v414 = vld [vmem:[#allocation2 + $0xd0] sm:$0xff]
        %v415 = vld [vmem:[#allocation2 + $0xd8] sm:$0xff]
        %v416 = vld [vmem:[#allocation2 + $0xe0] sm:$0xff]
        %v417 = vld [vmem:[#allocation2 + $0xe8] sm:$0xff]
        %v418 = vld [vmem:[#allocation2 + $0xf0] sm:$0xff]
        %v419 = vld [vmem:[#allocation2 + $0xf8] sm:$0xff]
        %v420 = vld [vmem:[#allocation2 + $0x100] sm:$0xff]
        %v421 = vld [vmem:[#allocation2 + $0x108] sm:$0xff]
        %v422 = vld [vmem:[#allocation2 + $0x110] sm:$0xff]
        %v423 = vld [vmem:[#allocation2 + $0x118] sm:$0xff]
        %v424 = vld [vmem:[#allocation2 + $0x120] sm:$0xff]
        %v425 = vld [vmem:[#allocation2 + $0x128] sm:$0xff]
        %v426 = vld [vmem:[#allocation2 + $0x130] sm:$0xff]
        %v427 = vld [vmem:[#allocation2 + $0x138] sm:$0xff]
        %v428 = vld [vmem:[#allocation2 + $0x140] sm:$0xff]
        %v429 = vld [vmem:[#allocation2 + $0x148] sm:$0xff]
        %v430 = vld [vmem:[#allocation2 + $0x150] sm:$0xff]
        %v431 = vld [vmem:[#allocation2 + $0x158] sm:$0xff]
        %v432 = vld [vmem:[#allocation2 + $0x160] sm:$0xff]
        %v433 = vld [vmem:[#allocation2 + $0x168] sm:$0xff]
        %v434 = vld [vmem:[#allocation2 + $0x170] sm:$0xff]
        %v435 = vld [vmem:[#allocation2 + $0x178] sm:$0xff]
        %v436 = vld [vmem:[#allocation2 + $0x180] sm:$0xff]
        %v437 = vld [vmem:[#allocation2 + $0x188] sm:$0xff]
        %v438 = vld [vmem:[#allocation2 + $0x190] sm:$0xff]
        %v439 = vld [vmem:[#allocation2 + $0x198] sm:$0xff]
        %v440 = vld [vmem:[#allocation2 + $0x1a0] sm:$0xff]
        %v441 = vld [vmem:[#allocation2 + $0x1a8] sm:$0xff]
        %v442 = vld [vmem:[#allocation2 + $0x1b0] sm:$0xff]
        %v443 = vld [vmem:[#allocation2 + $0x1b8] sm:$0xff]
        %v444 = vld [vmem:[#allocation2 + $0x1c0] sm:$0xff]
        %v445 = vld [vmem:[#allocation2 + $0x1c8] sm:$0xff]
        %v446 = vld [vmem:[#allocation2 + $0x1d0] sm:$0xff]
        %v447 = vld [vmem:[#allocation2 + $0x1d8] sm:$0xff]
        %v448 = vld [vmem:[#allocation2 + $0x1e0] sm:$0xff]
        %v449 = vld [vmem:[#allocation2 + $0x1e8] sm:$0xff]
        %v450 = vld [vmem:[#allocation2 + $0x1f0] sm:$0xff]
        %v451 = vld [vmem:[#allocation2 + $0x1f8] sm:$0xff]
        %v452 = vld [vmem:[%s307] sm:$0xff]
        %v453 = vld [vmem:[%s307 + $0x8] sm:$0xff]
        %v454 = vld [vmem:[%s307 + $0x10] sm:$0xf]
        %v455 = vld [vmem:[%s307 + $0x14] sm:$0xff]
        %v456 = vld [vmem:[%s307 + $0x1c] sm:$0xff]
        %v457 = vld [vmem:[%s307 + $0x24] sm:$0xf]
        %v458 = vld [vmem:[%s307 + $0x28] sm:$0xff]
        %v459 = vld [vmem:[%s307 + $0x30] sm:$0xff]
        %v460 = vld [vmem:[%s307 + $0x38] sm:$0xf]
        %v461 = vld [vmem:[%s307 + $0x3c] sm:$0xff]
        %v462 = vld [vmem:[%s307 + $0x44] sm:$0xff]
        %v463 = vld [vmem:[%s307 + $0x4c] sm:$0xf]
        %v464 = vld [vmem:[%s307 + $0x50] sm:$0xff]
        %v465 = vld [vmem:[%s307 + $0x58] sm:$0xff]
        %v466 = vld [vmem:[%s307 + $0x60] sm:$0xf]
        %v467 = vld [vmem:[%s307 + $0x64] sm:$0xff]
        %v468 = vld [vmem:[%s307 + $0x6c] sm:$0xff]
        %v469 = vld [vmem:[%s307 + $0x74] sm:$0xf]
        %v470 = vld [vmem:[%s307 + $0x78] sm:$0xff]
        %v471 = vld [vmem:[%s307 + $0x80] sm:$0xff]
        %v472 = vld [vmem:[%s307 + $0x88] sm:$0xf]
        %v473 = vld [vmem:[%s307 + $0x8c] sm:$0xff]
        %v474 = vld [vmem:[%s307 + $0x94] sm:$0xff]
        %v475 = vld [vmem:[%s307 + $0x9c] sm:$0xf]
        %v476 = vld [vmem:[%s307 + $0xa0] sm:$0xff]
        %v477 = vld [vmem:[%s307 + $0xa8] sm:$0xff]
        %v478 = vld [vmem:[%s307 + $0xb0] sm:$0xf]
        %v479 = vld [vmem:[%s307 + $0xb4] sm:$0xff]
        %v480 = vld [vmem:[%s307 + $0xbc] sm:$0xff]
        %v481 = vld [vmem:[%s307 + $0xc4] sm:$0xf]
        %v482 = vld [vmem:[%s307 + $0xc8] sm:$0xff]
        %v483 = vld [vmem:[%s307 + $0xd0] sm:$0xff]
        %v484 = vld [vmem:[%s307 + $0xd8] sm:$0xf]
        %v485 = vld [vmem:[%s307 + $0xdc] sm:$0xff]
        %v486 = vld [vmem:[%s307 + $0xe4] sm:$0xff]
        %v487 = vld [vmem:[%s307 + $0xec] sm:$0xf]
        %v488 = vld [vmem:[%s307 + $0xf0] sm:$0xff]
        %v489 = vld [vmem:[%s307 + $0xf8] sm:$0xff]
        %v490 = vld [vmem:[%s307 + $0x100] sm:$0xf]
        %v491 = vld [vmem:[%s307 + $0x104] sm:$0xff]
        %v492 = vld [vmem:[%s307 + $0x10c] sm:$0xff]
        %v493 = vld [vmem:[%s307 + $0x114] sm:$0xf]
        %v494 = vld [vmem:[%s307 + $0x118] sm:$0xff]
        %v495 = vld [vmem:[%s307 + $0x120] sm:$0xff]
        %v496 = vld [vmem:[%s307 + $0x128] sm:$0xf]
        %v497 = vld [vmem:[%s307 + $0x12c] sm:$0xff]
        %v498 = vld [vmem:[%s307 + $0x134] sm:$0xff]
        %v499 = vld [vmem:[%s307 + $0x13c] sm:$0xf]
        %v500 = vld [vmem:[%s307 + $0x140] sm:$0xff]
        %v501 = vld [vmem:[%s307 + $0x148] sm:$0xff]
        %v502 = vld [vmem:[%s307 + $0x150] sm:$0xf]
        %v503 = vld [vmem:[%s307 + $0x154] sm:$0xff]
        %v504 = vld [vmem:[%s307 + $0x15c] sm:$0xff]
        %v505 = vld [vmem:[%s307 + $0x164] sm:$0xf]
        %v506 = vld [vmem:[%s307 + $0x168] sm:$0xff]
        %v507 = vld [vmem:[%s307 + $0x170] sm:$0xff]
        %v508 = vld [vmem:[%s307 + $0x178] sm:$0xf]
        %v509 = vld [vmem:[%s307 + $0x17c] sm:$0xff]
        %v510 = vld [vmem:[%s307 + $0x184] sm:$0xff]
        %v511 = vld [vmem:[%s307 + $0x18c] sm:$0xf]
        %v512 = vld [vmem:[%s307 + $0x190] sm:$0xff]
        %v513 = vld [vmem:[%s307 + $0x198] sm:$0xff]
        %v514 = vld [vmem:[%s307 + $0x1a0] sm:$0xf]
        %v515 = vld [vmem:[%s307 + $0x1a4] sm:$0xff]
        %v516 = vld [vmem:[%s307 + $0x1ac] sm:$0xff]
        %v517 = vld [vmem:[%s307 + $0x1b4] sm:$0xf]
        %v518 = vld [vmem:[%s307 + $0x1b8] sm:$0xff]
        %v519 = vld [vmem:[%s307 + $0x1c0] sm:$0xff]
        %v520 = vld [vmem:[%s307 + $0x1c8] sm:$0xf]
        %v521 = vld [vmem:[%s307 + $0x1cc] sm:$0xff]
        %v522 = vld [vmem:[%s307 + $0x1d4] sm:$0xff]
        %v523 = vld [vmem:[%s307 + $0x1dc] sm:$0xf]
        %v524 = vld [vmem:[%s307 + $0x1e0] sm:$0xff]
        %v525 = vld [vmem:[%s307 + $0x1e8] sm:$0xff]
        %v526 = vld [vmem:[%s307 + $0x1f0] sm:$0xf]
        %v527 = vld [vmem:[%s307 + $0x1f4] sm:$0xff]
        %v528 = vld [vmem:[%s307 + $0x1fc] sm:$0xff]
        %v529 = vld [vmem:[%s307 + $0x204] sm:$0xf]
        %v530 = vld [vmem:[%s307 + $0x208] sm:$0xff]
        %v531 = vld [vmem:[%s307 + $0x210] sm:$0xff]
        %v532 = vld [vmem:[%s307 + $0x218] sm:$0xf]
        %v533 = vld [vmem:[%s307 + $0x21c] sm:$0xff]
        %v534 = vld [vmem:[%s307 + $0x224] sm:$0xff]
        %v535 = vld [vmem:[%s307 + $0x22c] sm:$0xf]
        %v536 = vld [vmem:[%s307 + $0x230] sm:$0xff]
        %v537 = vld [vmem:[%s307 + $0x238] sm:$0xff]
        %v538 = vld [vmem:[%s307 + $0x240] sm:$0xf]
        %v539 = vld [vmem:[%s307 + $0x244] sm:$0xff]
        %v540 = vld [vmem:[%s307 + $0x24c] sm:$0xff]
        %v541 = vld [vmem:[%s307 + $0x254] sm:$0xf]
        %v542 = vld [vmem:[%s307 + $0x258] sm:$0xff]
        %v543 = vld [vmem:[%s307 + $0x260] sm:$0xff]
        %v544 = vld [vmem:[%s307 + $0x268] sm:$0xf]
        %v545 = vld [vmem:[%s307 + $0x26c] sm:$0xff]
        %v546 = vld [vmem:[%s307 + $0x274] sm:$0xff]
        %v547 = vld [vmem:[%s307 + $0x27c] sm:$0xf]
        %v548 = vld [vmem:[%s315] sm:$0xff]
        %v549 = vld [vmem:[%s315 + $0x8] sm:$0xff]
        %v550 = vld [vmem:[%s315 + $0x10] sm:$0xff]
        %v551 = vld [vmem:[%s315 + $0x18] sm:$0xff]
        %v552 = vld [vmem:[%s315 + $0x20] sm:$0xff]
        %v553 = vld [vmem:[%s315 + $0x28] sm:$0xff]
        %v554 = vld [vmem:[%s315 + $0x30] sm:$0xff]
        %v555 = vld [vmem:[%s315 + $0x38] sm:$0xff]
        %v556 = vld [vmem:[%s315 + $0x40] sm:$0xff]
        %v557 = vld [vmem:[%s315 + $0x48] sm:$0xff]
        %v558 = vld [vmem:[%s315 + $0x50] sm:$0xff]
        %v559 = vld [vmem:[%s315 + $0x58] sm:$0xff]
        %v560 = vld [vmem:[%s315 + $0x60] sm:$0xff]
        %v561 = vld [vmem:[%s315 + $0x68] sm:$0xff]
        %v562 = vld [vmem:[%s315 + $0x70] sm:$0xff]
        %v563 = vld [vmem:[%s315 + $0x78] sm:$0xff]
        %v564 = vld [vmem:[%s315 + $0x80] sm:$0xff]
        %v565 = vld [vmem:[%s315 + $0x88] sm:$0xff]
        %v566 = vld [vmem:[%s315 + $0x90] sm:$0xff]
        %v567 = vld [vmem:[%s315 + $0x98] sm:$0xff]
        %v568 = vld [vmem:[%s315 + $0xa0] sm:$0xff]
        %v569 = vld [vmem:[%s315 + $0xa8] sm:$0xff]
        %v570 = vld [vmem:[%s315 + $0xb0] sm:$0xff]
        %v571 = vld [vmem:[%s315 + $0xb8] sm:$0xff]
        %v572 = vld [vmem:[%s315 + $0xc0] sm:$0xff]
        %v573 = vld [vmem:[%s315 + $0xc8] sm:$0xff]
        %v574 = vld [vmem:[%s315 + $0xd0] sm:$0xff]
        %v575 = vld [vmem:[%s315 + $0xd8] sm:$0xff]
        %v576 = vld [vmem:[%s315 + $0xe0] sm:$0xff]
        %v577 = vld [vmem:[%s315 + $0xe8] sm:$0xff]
        %v578 = vld [vmem:[%s315 + $0xf0] sm:$0xff]
        %v579 = vld [vmem:[%s315 + $0xf8] sm:$0xff]
        %v580 = vld [vmem:[%s315 + $0x100] sm:$0xff]
        %v581 = vld [vmem:[%s315 + $0x108] sm:$0xff]
        %v582 = vld [vmem:[%s315 + $0x110] sm:$0xff]
        %v583 = vld [vmem:[%s315 + $0x118] sm:$0xff]
        %v584 = vld [vmem:[%s315 + $0x120] sm:$0xff]
        %v585 = vld [vmem:[%s315 + $0x128] sm:$0xff]
        %v586 = vld [vmem:[%s315 + $0x130] sm:$0xff]
        %v587 = vld [vmem:[%s315 + $0x138] sm:$0xff]
        %v588 = vld [vmem:[%s315 + $0x140] sm:$0xff]
        %v589 = vld [vmem:[%s315 + $0x148] sm:$0xff]
        %v590 = vld [vmem:[%s315 + $0x150] sm:$0xff]
        %v591 = vld [vmem:[%s315 + $0x158] sm:$0xff]
        %v592 = vld [vmem:[%s315 + $0x160] sm:$0xff]
        %v593 = vld [vmem:[%s315 + $0x168] sm:$0xff]
        %v594 = vld [vmem:[%s315 + $0x170] sm:$0xff]
        %v595 = vld [vmem:[%s315 + $0x178] sm:$0xff]
        %v596 = vld [vmem:[%s315 + $0x180] sm:$0xff]
        %v597 = vld [vmem:[%s315 + $0x188] sm:$0xff]
        %v598 = vld [vmem:[%s315 + $0x190] sm:$0xff]
        %v599 = vld [vmem:[%s315 + $0x198] sm:$0xff]
        %v600 = vld [vmem:[%s315 + $0x1a0] sm:$0xff]
        %v601 = vld [vmem:[%s315 + $0x1a8] sm:$0xff]
        %v602 = vld [vmem:[%s315 + $0x1b0] sm:$0xff]
        %v603 = vld [vmem:[%s315 + $0x1b8] sm:$0xff]
        %v604 = vld [vmem:[%s315 + $0x1c0] sm:$0xff]
        %v605 = vld [vmem:[%s315 + $0x1c8] sm:$0xff]
        %v606 = vld [vmem:[%s315 + $0x1d0] sm:$0xff]
        %v607 = vld [vmem:[%s315 + $0x1d8] sm:$0xff]
        %v608 = vld [vmem:[%s315 + $0x1e0] sm:$0xff]
        %v609 = vld [vmem:[%s315 + $0x1e8] sm:$0xff]
        %v610 = vld [vmem:[%s315 + $0x1f0] sm:$0xff]
        %v611 = vld [vmem:[%s315 + $0x1f8] sm:$0xff]
        %v612 = vld [vmem:[%s315 + $0x200] sm:$0xff]
        %v613 = vld [vmem:[%s315 + $0x208] sm:$0xff]
        %v614 = vld [vmem:[%s315 + $0x210] sm:$0xff]
        %v615 = vld [vmem:[%s315 + $0x218] sm:$0xff]
        %v616 = vld [vmem:[%s315 + $0x220] sm:$0xff]
        %v617 = vld [vmem:[%s315 + $0x228] sm:$0xff]
        %v618 = vld [vmem:[%s315 + $0x230] sm:$0xff]
        %v619 = vld [vmem:[%s315 + $0x238] sm:$0xff]
        %v716 = vunpack.c.l.b16 %v452
        %v717 = vunpack.c.h.b16 %v452
        %v718 = vunpack.c.l.b16 %v453
        %v719 = vunpack.c.h.b16 %v453
        %v720 = vunpack.c.l.b16 %v454
        %v721 = vunpack.c.l.b16 %v455
        %v722 = vunpack.c.h.b16 %v455
        %v723 = vunpack.c.l.b16 %v456
        %v724 = vunpack.c.h.b16 %v456
        %v725 = vunpack.c.l.b16 %v457
        %v726 = vunpack.c.l.b16 %v458
        %v727 = vunpack.c.h.b16 %v458
        %v728 = vunpack.c.l.b16 %v459
        %v729 = vunpack.c.h.b16 %v459
        %v730 = vunpack.c.l.b16 %v460
        %v731 = vunpack.c.l.b16 %v461
        %v732 = vunpack.c.h.b16 %v461
        %v733 = vunpack.c.l.b16 %v462
        %v734 = vunpack.c.h.b16 %v462
        %v735 = vunpack.c.l.b16 %v463
        %v736 = vunpack.c.l.b16 %v464
        %v737 = vunpack.c.h.b16 %v464
        %v738 = vunpack.c.l.b16 %v465
        %v739 = vunpack.c.h.b16 %v465
        %v740 = vunpack.c.l.b16 %v466
        %v741 = vunpack.c.l.b16 %v467
        %v742 = vunpack.c.h.b16 %v467
        %v743 = vunpack.c.l.b16 %v468
        %v744 = vunpack.c.h.b16 %v468
        %v745 = vunpack.c.l.b16 %v469
        %v746 = vunpack.c.l.b16 %v470
        %v747 = vunpack.c.h.b16 %v470
        %v748 = vunpack.c.l.b16 %v471
        %v749 = vunpack.c.h.b16 %v471
        %v750 = vunpack.c.l.b16 %v472
        %v751 = vunpack.c.l.b16 %v473
        %v752 = vunpack.c.h.b16 %v473
        %v753 = vunpack.c.l.b16 %v474
        %v754 = vunpack.c.h.b16 %v474
        %v755 = vunpack.c.l.b16 %v475
        %v756 = vunpack.c.l.b16 %v476
        %v757 = vunpack.c.h.b16 %v476
        %v758 = vunpack.c.l.b16 %v477
        %v759 = vunpack.c.h.b16 %v477
        %v760 = vunpack.c.l.b16 %v478
        %v761 = vunpack.c.l.b16 %v479
        %v762 = vunpack.c.h.b16 %v479
        %v763 = vunpack.c.l.b16 %v480
        %v764 = vunpack.c.h.b16 %v480
        %v765 = vunpack.c.l.b16 %v481
        %v766 = vunpack.c.l.b16 %v482
        %v767 = vunpack.c.h.b16 %v482
        %v768 = vunpack.c.l.b16 %v483
        %v769 = vunpack.c.h.b16 %v483
        %v770 = vunpack.c.l.b16 %v484
        %v771 = vunpack.c.l.b16 %v485
        %v772 = vunpack.c.h.b16 %v485
        %v773 = vunpack.c.l.b16 %v486
        %v774 = vunpack.c.h.b16 %v486
        %v775 = vunpack.c.l.b16 %v487
        %v776 = vunpack.c.l.b16 %v488
        %v777 = vunpack.c.h.b16 %v488
        %v778 = vunpack.c.l.b16 %v489
        %v779 = vunpack.c.h.b16 %v489
        %v780 = vunpack.c.l.b16 %v490
        %v781 = vunpack.c.l.b16 %v491
        %v782 = vunpack.c.h.b16 %v491
        %v783 = vunpack.c.l.b16 %v492
        %v784 = vunpack.c.h.b16 %v492
        %v785 = vunpack.c.l.b16 %v493
        %v786 = vunpack.c.l.b16 %v494
        %v787 = vunpack.c.h.b16 %v494
        %v788 = vunpack.c.l.b16 %v495
        %v789 = vunpack.c.h.b16 %v495
        %v790 = vunpack.c.l.b16 %v496
        %v791 = vunpack.c.l.b16 %v497
        %v792 = vunpack.c.h.b16 %v497
        %v793 = vunpack.c.l.b16 %v498
        %v794 = vunpack.c.h.b16 %v498
        %v795 = vunpack.c.l.b16 %v499
        %v796 = vunpack.c.l.b16 %v500
        %v797 = vunpack.c.h.b16 %v500
        %v798 = vunpack.c.l.b16 %v501
        %v799 = vunpack.c.h.b16 %v501
        %v800 = vunpack.c.l.b16 %v502
        %v801 = vunpack.c.l.b16 %v503
        %v802 = vunpack.c.h.b16 %v503
        %v803 = vunpack.c.l.b16 %v504
        %v804 = vunpack.c.h.b16 %v504
        %v805 = vunpack.c.l.b16 %v505
        %v806 = vunpack.c.l.b16 %v506
        %v807 = vunpack.c.h.b16 %v506
        %v808 = vunpack.c.l.b16 %v507
        %v809 = vunpack.c.h.b16 %v507
        %v810 = vunpack.c.l.b16 %v508
        %v811 = vunpack.c.l.b16 %v509
        %v812 = vunpack.c.h.b16 %v509
        %v813 = vunpack.c.l.b16 %v510
        %v814 = vunpack.c.h.b16 %v510
        %v815 = vunpack.c.l.b16 %v511
        %v816 = vunpack.c.l.b16 %v512
        %v817 = vunpack.c.h.b16 %v512
        %v818 = vunpack.c.l.b16 %v513
        %v819 = vunpack.c.h.b16 %v513
        %v820 = vunpack.c.l.b16 %v514
        %v821 = vunpack.c.l.b16 %v515
        %v822 = vunpack.c.h.b16 %v515
        %v823 = vunpack.c.l.b16 %v516
        %v824 = vunpack.c.h.b16 %v516
        %v825 = vunpack.c.l.b16 %v517
        %v826 = vunpack.c.l.b16 %v518
        %v827 = vunpack.c.h.b16 %v518
        %v828 = vunpack.c.l.b16 %v519
        %v829 = vunpack.c.h.b16 %v519
        %v830 = vunpack.c.l.b16 %v520
        %v831 = vunpack.c.l.b16 %v521
        %v832 = vunpack.c.h.b16 %v521
        %v833 = vunpack.c.l.b16 %v522
        %v834 = vunpack.c.h.b16 %v522
        %v835 = vunpack.c.l.b16 %v523
        %v836 = vunpack.c.l.b16 %v524
        %v837 = vunpack.c.h.b16 %v524
        %v838 = vunpack.c.l.b16 %v525
        %v839 = vunpack.c.h.b16 %v525
        %v840 = vunpack.c.l.b16 %v526
        %v841 = vunpack.c.l.b16 %v527
        %v842 = vunpack.c.h.b16 %v527
        %v843 = vunpack.c.l.b16 %v528
        %v844 = vunpack.c.h.b16 %v528
        %v845 = vunpack.c.l.b16 %v529
        %v846 = vunpack.c.l.b16 %v530
        %v847 = vunpack.c.h.b16 %v530
        %v848 = vunpack.c.l.b16 %v531
        %v849 = vunpack.c.h.b16 %v531
        %v850 = vunpack.c.l.b16 %v532
        %v851 = vunpack.c.l.b16 %v533
        %v852 = vunpack.c.h.b16 %v533
        %v853 = vunpack.c.l.b16 %v534
        %v854 = vunpack.c.h.b16 %v534
        %v855 = vunpack.c.l.b16 %v535
        %v856 = vunpack.c.l.b16 %v536
        %v857 = vunpack.c.h.b16 %v536
        %v858 = vunpack.c.l.b16 %v537
        %v859 = vunpack.c.h.b16 %v537
        %v860 = vunpack.c.l.b16 %v538
        %v861 = vunpack.c.l.b16 %v539
        %v862 = vunpack.c.h.b16 %v539
        %v863 = vunpack.c.l.b16 %v540
        %v864 = vunpack.c.h.b16 %v540
        %v865 = vunpack.c.l.b16 %v541
        %v866 = vunpack.c.l.b16 %v542
        %v867 = vunpack.c.h.b16 %v542
        %v868 = vunpack.c.l.b16 %v543
        %v869 = vunpack.c.h.b16 %v543
        %v870 = vunpack.c.l.b16 %v544
        %v871 = vunpack.c.l.b16 %v545
        %v872 = vunpack.c.h.b16 %v545
        %v873 = vunpack.c.l.b16 %v546
        %v874 = vunpack.c.h.b16 %v546
        %v875 = vunpack.c.l.b16 %v547
        %v876 = vpack.c.b16 %v721, %v716
        %v877 = vpack.c.b16 %v722, %v717
        %v878 = vpack.c.b16 %v723, %v718
        %v879 = vpack.c.b16 %v724, %v719
        %v880 = vpack.c.b16 %v725, %v720
        %v881 = vpack.c.b16 %v731, %v726
        %v882 = vpack.c.b16 %v732, %v727
        %v883 = vpack.c.b16 %v733, %v728
        %v884 = vpack.c.b16 %v734, %v729
        %v885 = vpack.c.b16 %v735, %v730
        %v886 = vpack.c.b16 %v741, %v736
        %v887 = vpack.c.b16 %v742, %v737
        %v888 = vpack.c.b16 %v743, %v738
        %v889 = vpack.c.b16 %v744, %v739
        %v890 = vpack.c.b16 %v745, %v740
        %v891 = vpack.c.b16 %v751, %v746
        %v892 = vpack.c.b16 %v752, %v747
        %v893 = vpack.c.b16 %v753, %v748
        %v894 = vpack.c.b16 %v754, %v749
        %v895 = vpack.c.b16 %v755, %v750
        %v896 = vpack.c.b16 %v761, %v756
        %v897 = vpack.c.b16 %v762, %v757
        %v898 = vpack.c.b16 %v763, %v758
        %v899 = vpack.c.b16 %v764, %v759
        %v900 = vpack.c.b16 %v765, %v760
        %v901 = vpack.c.b16 %v771, %v766
        %v902 = vpack.c.b16 %v772, %v767
        %v903 = vpack.c.b16 %v773, %v768
        %v904 = vpack.c.b16 %v774, %v769
        %v905 = vpack.c.b16 %v775, %v770
        %v906 = vpack.c.b16 %v781, %v776
        %v907 = vpack.c.b16 %v782, %v777
        %v908 = vpack.c.b16 %v783, %v778
        %v909 = vpack.c.b16 %v784, %v779
        %v910 = vpack.c.b16 %v785, %v780
        %v911 = vpack.c.b16 %v791, %v786
        %v912 = vpack.c.b16 %v792, %v787
        %v913 = vpack.c.b16 %v793, %v788
        %v914 = vpack.c.b16 %v794, %v789
        %v915 = vpack.c.b16 %v795, %v790
        %v916 = vpack.c.b16 %v801, %v796
        %v917 = vpack.c.b16 %v802, %v797
        %v918 = vpack.c.b16 %v803, %v798
        %v919 = vpack.c.b16 %v804, %v799
        %v920 = vpack.c.b16 %v805, %v800
        %v921 = vpack.c.b16 %v811, %v806
        %v922 = vpack.c.b16 %v812, %v807
        %v923 = vpack.c.b16 %v813, %v808
        %v924 = vpack.c.b16 %v814, %v809
        %v925 = vpack.c.b16 %v815, %v810
        %v926 = vpack.c.b16 %v821, %v816
        %v927 = vpack.c.b16 %v822, %v817
        %v928 = vpack.c.b16 %v823, %v818
        %v929 = vpack.c.b16 %v824, %v819
        %v930 = vpack.c.b16 %v825, %v820
        %v931 = vpack.c.b16 %v831, %v826
        %v932 = vpack.c.b16 %v832, %v827
        %v933 = vpack.c.b16 %v833, %v828
        %v934 = vpack.c.b16 %v834, %v829
        %v935 = vpack.c.b16 %v835, %v830
        %v936 = vpack.c.b16 %v841, %v836
        %v937 = vpack.c.b16 %v842, %v837
        %v938 = vpack.c.b16 %v843, %v838
        %v939 = vpack.c.b16 %v844, %v839
        %v940 = vpack.c.b16 %v845, %v840
        %v941 = vpack.c.b16 %v851, %v846
        %v942 = vpack.c.b16 %v852, %v847
        %v943 = vpack.c.b16 %v853, %v848
        %v944 = vpack.c.b16 %v854, %v849
        %v945 = vpack.c.b16 %v855, %v850
        %v946 = vpack.c.b16 %v861, %v856
        %v947 = vpack.c.b16 %v862, %v857
        %v948 = vpack.c.b16 %v863, %v858
        %v949 = vpack.c.b16 %v864, %v859
        %v950 = vpack.c.b16 %v865, %v860
        %v951 = vpack.c.b16 %v871, %v866
        %v952 = vpack.c.b16 %v872, %v867
        %v953 = vpack.c.b16 %v873, %v868
        %v954 = vpack.c.b16 %v874, %v869
        %v955 = vpack.c.b16 %v875, %v870
        %v1092 = vunpack.c.l.b16 %v548
        %v1093 = vunpack.c.h.b16 %v548
        %v1094 = vunpack.c.l.b16 %v549
        %v1095 = vunpack.c.h.b16 %v549
        %v1096 = vunpack.c.l.b16 %v550
        %v1097 = vunpack.c.h.b16 %v550
        %v1098 = vunpack.c.l.b16 %v551
        %v1099 = vunpack.c.h.b16 %v551
        %v1100 = vunpack.c.l.b16 %v552
        %v1101 = vunpack.c.h.b16 %v552
        %v1102 = vunpack.c.l.b16 %v553
        %v1103 = vunpack.c.h.b16 %v553
        %v1104 = vunpack.c.l.b16 %v554
        %v1105 = vunpack.c.h.b16 %v554
        %v1106 = vunpack.c.l.b16 %v555
        %v1107 = vunpack.c.h.b16 %v555
        %v1108 = vunpack.c.l.b16 %v556
        %v1109 = vunpack.c.h.b16 %v556
        %v1110 = vunpack.c.l.b16 %v557
        %v1111 = vunpack.c.h.b16 %v557
        %v1112 = vunpack.c.l.b16 %v558
        %v1113 = vunpack.c.h.b16 %v558
        %v1114 = vunpack.c.l.b16 %v559
        %v1115 = vunpack.c.h.b16 %v559
        %v1116 = vunpack.c.l.b16 %v560
        %v1117 = vunpack.c.h.b16 %v560
        %v1118 = vunpack.c.l.b16 %v561
        %v1119 = vunpack.c.h.b16 %v561
        %v1120 = vunpack.c.l.b16 %v562
        %v1121 = vunpack.c.h.b16 %v562
        %v1122 = vunpack.c.l.b16 %v563
        %v1123 = vunpack.c.h.b16 %v563
        %v1124 = vunpack.c.l.b16 %v564
        %v1125 = vunpack.c.h.b16 %v564
        %v1126 = vunpack.c.l.b16 %v565
        %v1127 = vunpack.c.h.b16 %v565
        %v1128 = vunpack.c.l.b16 %v566
        %v1129 = vunpack.c.h.b16 %v566
        %v1130 = vunpack.c.l.b16 %v567
        %v1131 = vunpack.c.h.b16 %v567
        %v1132 = vunpack.c.l.b16 %v568
        %v1133 = vunpack.c.h.b16 %v568
        %v1134 = vunpack.c.l.b16 %v569
        %v1135 = vunpack.c.h.b16 %v569
        %v1136 = vunpack.c.l.b16 %v570
        %v1137 = vunpack.c.h.b16 %v570
        %v1138 = vunpack.c.l.b16 %v571
        %v1139 = vunpack.c.h.b16 %v571
        %v1140 = vunpack.c.l.b16 %v572
        %v1141 = vunpack.c.h.b16 %v572
        %v1142 = vunpack.c.l.b16 %v573
        %v1143 = vunpack.c.h.b16 %v573
        %v1144 = vunpack.c.l.b16 %v574
        %v1145 = vunpack.c.h.b16 %v574
        %v1146 = vunpack.c.l.b16 %v575
        %v1147 = vunpack.c.h.b16 %v575
        %v1148 = vunpack.c.l.b16 %v576
        %v1149 = vunpack.c.h.b16 %v576
        %v1150 = vunpack.c.l.b16 %v577
        %v1151 = vunpack.c.h.b16 %v577
        %v1152 = vunpack.c.l.b16 %v578
        %v1153 = vunpack.c.h.b16 %v578
        %v1154 = vunpack.c.l.b16 %v579
        %v1155 = vunpack.c.h.b16 %v579
        %v1156 = vunpack.c.l.b16 %v580
        %v1157 = vunpack.c.h.b16 %v580
        %v1158 = vunpack.c.l.b16 %v581
        %v1159 = vunpack.c.h.b16 %v581
        %v1160 = vunpack.c.l.b16 %v582
        %v1161 = vunpack.c.h.b16 %v582
        %v1162 = vunpack.c.l.b16 %v583
        %v1163 = vunpack.c.h.b16 %v583
        %v1164 = vunpack.c.l.b16 %v584
        %v1165 = vunpack.c.h.b16 %v584
        %v1166 = vunpack.c.l.b16 %v585
        %v1167 = vunpack.c.h.b16 %v585
        %v1168 = vunpack.c.l.b16 %v586
        %v1169 = vunpack.c.h.b16 %v586
        %v1170 = vunpack.c.l.b16 %v587
        %v1171 = vunpack.c.h.b16 %v587
        %v1172 = vunpack.c.l.b16 %v588
        %v1173 = vunpack.c.h.b16 %v588
        %v1174 = vunpack.c.l.b16 %v589
        %v1175 = vunpack.c.h.b16 %v589
        %v1176 = vunpack.c.l.b16 %v590
        %v1177 = vunpack.c.h.b16 %v590
        %v1178 = vunpack.c.l.b16 %v591
        %v1179 = vunpack.c.h.b16 %v591
        %v1180 = vunpack.c.l.b16 %v592
        %v1181 = vunpack.c.h.b16 %v592
        %v1182 = vunpack.c.l.b16 %v593
        %v1183 = vunpack.c.h.b16 %v593
        %v1184 = vunpack.c.l.b16 %v594
        %v1185 = vunpack.c.h.b16 %v594
        %v1186 = vunpack.c.l.b16 %v595
        %v1187 = vunpack.c.h.b16 %v595
        %v1188 = vunpack.c.l.b16 %v596
        %v1189 = vunpack.c.h.b16 %v596
        %v1190 = vunpack.c.l.b16 %v597
        %v1191 = vunpack.c.h.b16 %v597
        %v1192 = vunpack.c.l.b16 %v598
        %v1193 = vunpack.c.h.b16 %v598
        %v1194 = vunpack.c.l.b16 %v599
        %v1195 = vunpack.c.h.b16 %v599
        %v1196 = vunpack.c.l.b16 %v600
        %v1197 = vunpack.c.h.b16 %v600
        %v1198 = vunpack.c.l.b16 %v601
        %v1199 = vunpack.c.h.b16 %v601
        %v1200 = vunpack.c.l.b16 %v602
        %v1201 = vunpack.c.h.b16 %v602
        %v1202 = vunpack.c.l.b16 %v603
        %v1203 = vunpack.c.h.b16 %v603
        %v1204 = vunpack.c.l.b16 %v604
        %v1205 = vunpack.c.h.b16 %v604
        %v1206 = vunpack.c.l.b16 %v605
        %v1207 = vunpack.c.h.b16 %v605
        %v1208 = vunpack.c.l.b16 %v606
        %v1209 = vunpack.c.h.b16 %v606
        %v1210 = vunpack.c.l.b16 %v607
        %v1211 = vunpack.c.h.b16 %v607
        %v1212 = vunpack.c.l.b16 %v608
        %v1213 = vunpack.c.h.b16 %v608
        %v1214 = vunpack.c.l.b16 %v609
        %v1215 = vunpack.c.h.b16 %v609
        %v1216 = vunpack.c.l.b16 %v610
        %v1217 = vunpack.c.h.b16 %v610
        %v1218 = vunpack.c.l.b16 %v611
        %v1219 = vunpack.c.h.b16 %v611
        %v1220 = vunpack.c.l.b16 %v612
        %v1221 = vunpack.c.h.b16 %v612
        %v1222 = vunpack.c.l.b16 %v613
        %v1223 = vunpack.c.h.b16 %v613
        %v1224 = vunpack.c.l.b16 %v614
        %v1225 = vunpack.c.h.b16 %v614
        %v1226 = vunpack.c.l.b16 %v615
        %v1227 = vunpack.c.h.b16 %v615
        %v1228 = vunpack.c.l.b16 %v616
        %v1229 = vunpack.c.h.b16 %v616
        %v1230 = vunpack.c.l.b16 %v617
        %v1231 = vunpack.c.h.b16 %v617
        %v1232 = vunpack.c.l.b16 %v618
        %v1233 = vunpack.c.h.b16 %v618
        %v1234 = vunpack.c.l.b16 %v619
        %v1235 = vunpack.c.h.b16 %v619
        %v1236 = vpack.c.b16 %v1094, %v1092
        %v1237 = vpack.c.b16 %v1095, %v1093
        %v1238 = vpack.c.b16 %v1098, %v1096
        %v1239 = vpack.c.b16 %v1099, %v1097
        %v1240 = vpack.c.b16 %v1102, %v1100
        %v1241 = vpack.c.b16 %v1103, %v1101
        %v1242 = vpack.c.b16 %v1106, %v1104
        %v1243 = vpack.c.b16 %v1107, %v1105
        %v1244 = vpack.c.b16 %v1110, %v1108
        %v1245 = vpack.c.b16 %v1111, %v1109
        %v1246 = vpack.c.b16 %v1114, %v1112
        %v1247 = vpack.c.b16 %v1115, %v1113
        %v1248 = vpack.c.b16 %v1118, %v1116
        %v1249 = vpack.c.b16 %v1119, %v1117
        %v1250 = vpack.c.b16 %v1122, %v1120
        %v1251 = vpack.c.b16 %v1123, %v1121
        %v1252 = vpack.c.b16 %v1126, %v1124
        %v1253 = vpack.c.b16 %v1127, %v1125
        %v1254 = vpack.c.b16 %v1130, %v1128
        %v1255 = vpack.c.b16 %v1131, %v1129
        %v1256 = vpack.c.b16 %v1134, %v1132
        %v1257 = vpack.c.b16 %v1135, %v1133
        %v1258 = vpack.c.b16 %v1138, %v1136
        %v1259 = vpack.c.b16 %v1139, %v1137
        %v1260 = vpack.c.b16 %v1142, %v1140
        %v1261 = vpack.c.b16 %v1143, %v1141
        %v1262 = vpack.c.b16 %v1146, %v1144
        %v1263 = vpack.c.b16 %v1147, %v1145
        %v1264 = vpack.c.b16 %v1150, %v1148
        %v1265 = vpack.c.b16 %v1151, %v1149
        %v1266 = vpack.c.b16 %v1154, %v1152
        %v1267 = vpack.c.b16 %v1155, %v1153
        %v1268 = vpack.c.b16 %v1158, %v1156
        %v1269 = vpack.c.b16 %v1159, %v1157
        %v1270 = vpack.c.b16 %v1162, %v1160
        %v1271 = vpack.c.b16 %v1163, %v1161
        %v1272 = vpack.c.b16 %v1166, %v1164
        %v1273 = vpack.c.b16 %v1167, %v1165
        %v1274 = vpack.c.b16 %v1170, %v1168
        %v1275 = vpack.c.b16 %v1171, %v1169
        %v1276 = vpack.c.b16 %v1174, %v1172
        %v1277 = vpack.c.b16 %v1175, %v1173
        %v1278 = vpack.c.b16 %v1178, %v1176
        %v1279 = vpack.c.b16 %v1179, %v1177
        %v1280 = vpack.c.b16 %v1182, %v1180
        %v1281 = vpack.c.b16 %v1183, %v1181
        %v1282 = vpack.c.b16 %v1186, %v1184
        %v1283 = vpack.c.b16 %v1187, %v1185
        %v1284 = vpack.c.b16 %v1190, %v1188
        %v1285 = vpack.c.b16 %v1191, %v1189
        %v1286 = vpack.c.b16 %v1194, %v1192
        %v1287 = vpack.c.b16 %v1195, %v1193
        %v1288 = vpack.c.b16 %v1198, %v1196
        %v1289 = vpack.c.b16 %v1199, %v1197
        %v1290 = vpack.c.b16 %v1202, %v1200
        %v1291 = vpack.c.b16 %v1203, %v1201
        %v1292 = vpack.c.b16 %v1206, %v1204
        %v1293 = vpack.c.b16 %v1207, %v1205
        %v1294 = vpack.c.b16 %v1210, %v1208
        %v1295 = vpack.c.b16 %v1211, %v1209
        %v1296 = vpack.c.b16 %v1214, %v1212
        %v1297 = vpack.c.b16 %v1215, %v1213
        %v1298 = vpack.c.b16 %v1218, %v1216
        %v1299 = vpack.c.b16 %v1219, %v1217
        %v1300 = vpack.c.b16 %v1222, %v1220
        %v1301 = vpack.c.b16 %v1223, %v1221
        %v1302 = vpack.c.b16 %v1226, %v1224
        %v1303 = vpack.c.b16 %v1227, %v1225
        %v1304 = vpack.c.b16 %v1230, %v1228
        %v1305 = vpack.c.b16 %v1231, %v1229
        %v1306 = vpack.c.b16 %v1234, %v1232
        %v1307 = vpack.c.b16 %v1235, %v1233
        %vm1380 = vcmask 523264
        %v1382 = vsel %vm1380, %v880, 0
        %v1385 = vsel %vm1380, %v885, 0
        %v1388 = vsel %vm1380, %v890, 0
        %v1391 = vsel %vm1380, %v895, 0
        %v1394 = vsel %vm1380, %v900, 0
        %v1397 = vsel %vm1380, %v905, 0
        %v1400 = vsel %vm1380, %v910, 0
        %v1403 = vsel %vm1380, %v915, 0
        %v1406 = vsel %vm1380, %v920, 0
        %v1409 = vsel %vm1380, %v925, 0
        %v1412 = vsel %vm1380, %v930, 0
        %v1415 = vsel %vm1380, %v935, 0
        %v1418 = vsel %vm1380, %v940, 0
        %v1421 = vsel %vm1380, %v945, 0
        %v1424 = vsel %vm1380, %v950, 0
        %v1427 = vsel %vm1380, %v955, 0
        %1429 = vmatprep.subr.bf16.mxu0 %v1251
        %1430 = vmatpush1.bf16.msra.mxu0 %v1250
        %1431 = vmatprep.subr.bf16.mxu0 %v1249
        %1432 = vmatpush1.bf16.msra.mxu0 %v1248
        %1433 = vmatprep.subr.bf16.mxu0 %v1247
        %1434 = vmatpush1.bf16.msra.mxu0 %v1246
        %1435 = vmatprep.subr.bf16.mxu0 %v1245
        %1436 = vmatpush1.bf16.msra.mxu0 %v1244
        %1437 = vmatprep.subr.bf16.mxu0 %v1243
        %1438 = vmatpush1.bf16.msra.mxu0 %v1242
        %1439 = vmatprep.subr.bf16.mxu0 %v1241
        %1440 = vmatpush1.bf16.msra.mxu0 %v1240
        %1441 = vmatprep.subr.bf16.mxu0 %v1239
        %1442 = vmatpush1.bf16.msra.mxu0 %v1238
        %1443 = vmatprep.subr.bf16.mxu0 %v1237
        %1444 = vmatpush1.bf16.msra.mxu0 %v1236
        %1445 = vmatprep.subr.bf16.mxu0 %v1267
        %1446 = vmatpush2.bf16.msra.mxu0 %v1266
        %1447 = vmatprep.subr.bf16.mxu0 %v1265
        %1448 = vmatpush2.bf16.msra.mxu0 %v1264
        %1449 = vmatprep.subr.bf16.mxu0 %v1263
        %1450 = vmatpush2.bf16.msra.mxu0 %v1262
        %1451 = vmatprep.subr.bf16.mxu0 %v1261
        %1452 = vmatpush2.bf16.msra.mxu0 %v1260
        %1453 = vmatprep.subr.bf16.mxu0 %v1259
        %1454 = vmatpush2.bf16.msra.mxu0 %v1258
        %1455 = vmatprep.subr.bf16.mxu0 %v1257
        %1456 = vmatpush2.bf16.msra.mxu0 %v1256
        %1457 = vmatprep.subr.bf16.mxu0 %v1255
        %1458 = vmatpush2.bf16.msra.mxu0 %v1254
        %1459 = vmatprep.subr.bf16.mxu0 %v1253
        %1460 = vmatpush2.bf16.msra.mxu0 %v1252
        %1461 = vmatprep.mubr.bf16.mxu0 %v877
        %1462 = vmatmul.mubr.bf16.gmra.mxu0 %v876
        %v1463 = vpop.f32.mrf.mxu0
        %v1464 = vadd.f32 0.0, %v1463
        %v1465 = vpop.f32.mrf.mxu0
        %v1466 = vadd.f32 0.0, %v1465
        %v1467 = vpop.f32.mrf.mxu0
        %v1468 = vadd.f32 0.0, %v1467
        %v1469 = vpop.f32.mrf.mxu0
        %v1470 = vadd.f32 0.0, %v1469
        %1471 = vmatprep.mubr.bf16.mxu0 %v882
        %1472 = vmatmul.mubr.bf16.gmra.mxu0 %v881
        %v1473 = vpop.f32.mrf.mxu0
        %v1474 = vadd.f32 0.0, %v1473
        %v1475 = vpop.f32.mrf.mxu0
        %v1476 = vadd.f32 0.0, %v1475
        %v1477 = vpop.f32.mrf.mxu0
        %v1478 = vadd.f32 0.0, %v1477
        %v1479 = vpop.f32.mrf.mxu0
        %v1480 = vadd.f32 0.0, %v1479
        %1481 = vmatprep.mubr.bf16.mxu0 %v887
        %1482 = vmatmul.mubr.bf16.gmra.mxu0 %v886
        %v1483 = vpop.f32.mrf.mxu0
        %v1484 = vadd.f32 0.0, %v1483
        %v1485 = vpop.f32.mrf.mxu0
        %v1486 = vadd.f32 0.0, %v1485
        %v1487 = vpop.f32.mrf.mxu0
        %v1488 = vadd.f32 0.0, %v1487
        %v1489 = vpop.f32.mrf.mxu0
        %v1490 = vadd.f32 0.0, %v1489
        %1491 = vmatprep.mubr.bf16.mxu0 %v892
        %1492 = vmatmul.mubr.bf16.gmra.mxu0 %v891
        %v1493 = vpop.f32.mrf.mxu0
        %v1494 = vadd.f32 0.0, %v1493
        %v1495 = vpop.f32.mrf.mxu0
        %v1496 = vadd.f32 0.0, %v1495
        %v1497 = vpop.f32.mrf.mxu0
        %v1498 = vadd.f32 0.0, %v1497
        %v1499 = vpop.f32.mrf.mxu0
        %v1500 = vadd.f32 0.0, %v1499
        %1501 = vmatprep.mubr.bf16.mxu0 %v897
        %1502 = vmatmul.mubr.bf16.gmra.mxu0 %v896
        %v1503 = vpop.f32.mrf.mxu0
        %v1504 = vadd.f32 0.0, %v1503
        %v1505 = vpop.f32.mrf.mxu0
        %v1506 = vadd.f32 0.0, %v1505
        %v1507 = vpop.f32.mrf.mxu0
        %v1508 = vadd.f32 0.0, %v1507
        %v1509 = vpop.f32.mrf.mxu0
        %v1510 = vadd.f32 0.0, %v1509
        %1511 = vmatprep.mubr.bf16.mxu0 %v902
        %1512 = vmatmul.mubr.bf16.gmra.mxu0 %v901
        %v1513 = vpop.f32.mrf.mxu0
        %v1514 = vadd.f32 0.0, %v1513
        %v1515 = vpop.f32.mrf.mxu0
        %v1516 = vadd.f32 0.0, %v1515
        %v1517 = vpop.f32.mrf.mxu0
        %v1518 = vadd.f32 0.0, %v1517
        %v1519 = vpop.f32.mrf.mxu0
        %v1520 = vadd.f32 0.0, %v1519
        %1521 = vmatprep.mubr.bf16.mxu0 %v907
        %1522 = vmatmul.mubr.bf16.gmra.mxu0 %v906
        %v1523 = vpop.f32.mrf.mxu0
        %v1524 = vadd.f32 0.0, %v1523
        %v1525 = vpop.f32.mrf.mxu0
        %v1526 = vadd.f32 0.0, %v1525
        %v1527 = vpop.f32.mrf.mxu0
        %v1528 = vadd.f32 0.0, %v1527
        %v1529 = vpop.f32.mrf.mxu0
        %v1530 = vadd.f32 0.0, %v1529
        %1531 = vmatprep.mubr.bf16.mxu0 %v912
        %1532 = vmatmul.mubr.bf16.gmra.mxu0 %v911
        %v1533 = vpop.f32.mrf.mxu0
        %v1534 = vadd.f32 0.0, %v1533
        %v1535 = vpop.f32.mrf.mxu0
        %v1536 = vadd.f32 0.0, %v1535
        %v1537 = vpop.f32.mrf.mxu0
        %v1538 = vadd.f32 0.0, %v1537
        %v1539 = vpop.f32.mrf.mxu0
        %v1540 = vadd.f32 0.0, %v1539
        %1541 = vmatprep.mubr.bf16.mxu0 %v917
        %1542 = vmatmul.mubr.bf16.gmra.mxu0 %v916
        %v1543 = vpop.f32.mrf.mxu0
        %v1544 = vadd.f32 0.0, %v1543
        %v1545 = vpop.f32.mrf.mxu0
        %v1546 = vadd.f32 0.0, %v1545
        %v1547 = vpop.f32.mrf.mxu0
        %v1548 = vadd.f32 0.0, %v1547
        %v1549 = vpop.f32.mrf.mxu0
        %v1550 = vadd.f32 0.0, %v1549
        %1551 = vmatprep.mubr.bf16.mxu0 %v922
        %1552 = vmatmul.mubr.bf16.gmra.mxu0 %v921
        %v1553 = vpop.f32.mrf.mxu0
        %v1554 = vadd.f32 0.0, %v1553
        %v1555 = vpop.f32.mrf.mxu0
        %v1556 = vadd.f32 0.0, %v1555
        %v1557 = vpop.f32.mrf.mxu0
        %v1558 = vadd.f32 0.0, %v1557
        %v1559 = vpop.f32.mrf.mxu0
        %v1560 = vadd.f32 0.0, %v1559
        %1561 = vmatprep.mubr.bf16.mxu0 %v927
        %1562 = vmatmul.mubr.bf16.gmra.mxu0 %v926
        %v1563 = vpop.f32.mrf.mxu0
        %v1564 = vadd.f32 0.0, %v1563
        %v1565 = vpop.f32.mrf.mxu0
        %v1566 = vadd.f32 0.0, %v1565
        %v1567 = vpop.f32.mrf.mxu0
        %v1568 = vadd.f32 0.0, %v1567
        %v1569 = vpop.f32.mrf.mxu0
        %v1570 = vadd.f32 0.0, %v1569
        %1571 = vmatprep.mubr.bf16.mxu0 %v932
        %1572 = vmatmul.mubr.bf16.gmra.mxu0 %v931
        %v1573 = vpop.f32.mrf.mxu0
        %v1574 = vadd.f32 0.0, %v1573
        %v1575 = vpop.f32.mrf.mxu0
        %v1576 = vadd.f32 0.0, %v1575
        %v1577 = vpop.f32.mrf.mxu0
        %v1578 = vadd.f32 0.0, %v1577
        %v1579 = vpop.f32.mrf.mxu0
        %v1580 = vadd.f32 0.0, %v1579
        %1581 = vmatprep.mubr.bf16.mxu0 %v937
        %1582 = vmatmul.mubr.bf16.gmra.mxu0 %v936
        %v1583 = vpop.f32.mrf.mxu0
        %v1584 = vadd.f32 0.0, %v1583
        %v1585 = vpop.f32.mrf.mxu0
        %v1586 = vadd.f32 0.0, %v1585
        %v1587 = vpop.f32.mrf.mxu0
        %v1588 = vadd.f32 0.0, %v1587
        %v1589 = vpop.f32.mrf.mxu0
        %v1590 = vadd.f32 0.0, %v1589
        %1591 = vmatprep.mubr.bf16.mxu0 %v942
        %1592 = vmatmul.mubr.bf16.gmra.mxu0 %v941
        %v1593 = vpop.f32.mrf.mxu0
        %v1594 = vadd.f32 0.0, %v1593
        %v1595 = vpop.f32.mrf.mxu0
        %v1596 = vadd.f32 0.0, %v1595
        %v1597 = vpop.f32.mrf.mxu0
        %v1598 = vadd.f32 0.0, %v1597
        %v1599 = vpop.f32.mrf.mxu0
        %v1600 = vadd.f32 0.0, %v1599
        %1601 = vmatprep.mubr.bf16.mxu0 %v947
        %1602 = vmatmul.mubr.bf16.gmra.mxu0 %v946
        %v1603 = vpop.f32.mrf.mxu0
        %v1604 = vadd.f32 0.0, %v1603
        %v1605 = vpop.f32.mrf.mxu0
        %v1606 = vadd.f32 0.0, %v1605
        %v1607 = vpop.f32.mrf.mxu0
        %v1608 = vadd.f32 0.0, %v1607
        %v1609 = vpop.f32.mrf.mxu0
        %v1610 = vadd.f32 0.0, %v1609
        %1611 = vmatprep.mubr.bf16.mxu0 %v952
        %1612 = vmatmul.mubr.bf16.gmra.mxu0 %v951
        %v1613 = vpop.f32.mrf.mxu0
        %v1614 = vadd.f32 0.0, %v1613
        %v1615 = vpop.f32.mrf.mxu0
        %v1616 = vadd.f32 0.0, %v1615
        %v1617 = vpop.f32.mrf.mxu0
        %v1618 = vadd.f32 0.0, %v1617
        %v1619 = vpop.f32.mrf.mxu0
        %v1620 = vadd.f32 0.0, %v1619
        %1621 = vdwg.mxu0
        %1622 = vmatprep.subr.bf16.mxu0 %v1283
        %1623 = vmatpush1.bf16.msra.mxu0 %v1282
        %1624 = vmatprep.subr.bf16.mxu0 %v1281
        %1625 = vmatpush1.bf16.msra.mxu0 %v1280
        %1626 = vmatprep.subr.bf16.mxu0 %v1279
        %1627 = vmatpush1.bf16.msra.mxu0 %v1278
        %1628 = vmatprep.subr.bf16.mxu0 %v1277
        %1629 = vmatpush1.bf16.msra.mxu0 %v1276
        %1630 = vmatprep.subr.bf16.mxu0 %v1275
        %1631 = vmatpush1.bf16.msra.mxu0 %v1274
        %1632 = vmatprep.subr.bf16.mxu0 %v1273
        %1633 = vmatpush1.bf16.msra.mxu0 %v1272
        %1634 = vmatprep.subr.bf16.mxu0 %v1271
        %1635 = vmatpush1.bf16.msra.mxu0 %v1270
        %1636 = vmatprep.subr.bf16.mxu0 %v1269
        %1637 = vmatpush1.bf16.msra.mxu0 %v1268
        %1638 = vmatprep.subr.bf16.mxu0 %v1299
        %1639 = vmatpush2.bf16.msra.mxu0 %v1298
        %1640 = vmatprep.subr.bf16.mxu0 %v1297
        %1641 = vmatpush2.bf16.msra.mxu0 %v1296
        %1642 = vmatprep.subr.bf16.mxu0 %v1295
        %1643 = vmatpush2.bf16.msra.mxu0 %v1294
        %1644 = vmatprep.subr.bf16.mxu0 %v1293
        %1645 = vmatpush2.bf16.msra.mxu0 %v1292
        %1646 = vmatprep.subr.bf16.mxu0 %v1291
        %1647 = vmatpush2.bf16.msra.mxu0 %v1290
        %1648 = vmatprep.subr.bf16.mxu0 %v1289
        %1649 = vmatpush2.bf16.msra.mxu0 %v1288
        %1650 = vmatprep.subr.bf16.mxu0 %v1287
        %1651 = vmatpush2.bf16.msra.mxu0 %v1286
        %1652 = vmatprep.subr.bf16.mxu0 %v1285
        %1653 = vmatpush2.bf16.msra.mxu0 %v1284
        %1654 = vmatprep.mubr.bf16.mxu0 %v879
        %1655 = vmatmul.mubr.bf16.gmra.mxu0 %v878
        %v1656 = vpop.f32.mrf.mxu0
        %v1657 = vadd.f32 %v1464, %v1656
        %v1658 = vpop.f32.mrf.mxu0
        %v1659 = vadd.f32 %v1466, %v1658
        %v1660 = vpop.f32.mrf.mxu0
        %v1661 = vadd.f32 %v1468, %v1660
        %v1662 = vpop.f32.mrf.mxu0
        %v1663 = vadd.f32 %v1470, %v1662
        %1664 = vmatprep.mubr.bf16.mxu0 %v884
        %1665 = vmatmul.mubr.bf16.gmra.mxu0 %v883
        %v1666 = vpop.f32.mrf.mxu0
        %v1667 = vadd.f32 %v1474, %v1666
        %v1668 = vpop.f32.mrf.mxu0
        %v1669 = vadd.f32 %v1476, %v1668
        %v1670 = vpop.f32.mrf.mxu0
        %v1671 = vadd.f32 %v1478, %v1670
        %v1672 = vpop.f32.mrf.mxu0
        %v1673 = vadd.f32 %v1480, %v1672
        %1674 = vmatprep.mubr.bf16.mxu0 %v889
        %1675 = vmatmul.mubr.bf16.gmra.mxu0 %v888
        %v1676 = vpop.f32.mrf.mxu0
        %v1677 = vadd.f32 %v1484, %v1676
        %v1678 = vpop.f32.mrf.mxu0
        %v1679 = vadd.f32 %v1486, %v1678
        %v1680 = vpop.f32.mrf.mxu0
        %v1681 = vadd.f32 %v1488, %v1680
        %v1682 = vpop.f32.mrf.mxu0
        %v1683 = vadd.f32 %v1490, %v1682
        %1684 = vmatprep.mubr.bf16.mxu0 %v894
        %1685 = vmatmul.mubr.bf16.gmra.mxu0 %v893
        %v1686 = vpop.f32.mrf.mxu0
        %v1687 = vadd.f32 %v1494, %v1686
        %v1688 = vpop.f32.mrf.mxu0
        %v1689 = vadd.f32 %v1496, %v1688
        %v1690 = vpop.f32.mrf.mxu0
        %v1691 = vadd.f32 %v1498, %v1690
        %v1692 = vpop.f32.mrf.mxu0
        %v1693 = vadd.f32 %v1500, %v1692
        %1694 = vmatprep.mubr.bf16.mxu0 %v899
        %1695 = vmatmul.mubr.bf16.gmra.mxu0 %v898
        %v1696 = vpop.f32.mrf.mxu0
        %v1697 = vadd.f32 %v1504, %v1696
        %v1698 = vpop.f32.mrf.mxu0
        %v1699 = vadd.f32 %v1506, %v1698
        %v1700 = vpop.f32.mrf.mxu0
        %v1701 = vadd.f32 %v1508, %v1700
        %v1702 = vpop.f32.mrf.mxu0
        %v1703 = vadd.f32 %v1510, %v1702
        %1704 = vmatprep.mubr.bf16.mxu0 %v904
        %1705 = vmatmul.mubr.bf16.gmra.mxu0 %v903
        %v1706 = vpop.f32.mrf.mxu0
        %v1707 = vadd.f32 %v1514, %v1706
        %v1708 = vpop.f32.mrf.mxu0
        %v1709 = vadd.f32 %v1516, %v1708
        %v1710 = vpop.f32.mrf.mxu0
        %v1711 = vadd.f32 %v1518, %v1710
        %v1712 = vpop.f32.mrf.mxu0
        %v1713 = vadd.f32 %v1520, %v1712
        %1714 = vmatprep.mubr.bf16.mxu0 %v909
        %1715 = vmatmul.mubr.bf16.gmra.mxu0 %v908
        %v1716 = vpop.f32.mrf.mxu0
        %v1717 = vadd.f32 %v1524, %v1716
        %v1718 = vpop.f32.mrf.mxu0
        %v1719 = vadd.f32 %v1526, %v1718
        %v1720 = vpop.f32.mrf.mxu0
        %v1721 = vadd.f32 %v1528, %v1720
        %v1722 = vpop.f32.mrf.mxu0
        %v1723 = vadd.f32 %v1530, %v1722
        %1724 = vmatprep.mubr.bf16.mxu0 %v914
        %1725 = vmatmul.mubr.bf16.gmra.mxu0 %v913
        %v1726 = vpop.f32.mrf.mxu0
        %v1727 = vadd.f32 %v1534, %v1726
        %v1728 = vpop.f32.mrf.mxu0
        %v1729 = vadd.f32 %v1536, %v1728
        %v1730 = vpop.f32.mrf.mxu0
        %v1731 = vadd.f32 %v1538, %v1730
        %v1732 = vpop.f32.mrf.mxu0
        %v1733 = vadd.f32 %v1540, %v1732
        %1734 = vmatprep.mubr.bf16.mxu0 %v919
        %1735 = vmatmul.mubr.bf16.gmra.mxu0 %v918
        %v1736 = vpop.f32.mrf.mxu0
        %v1737 = vadd.f32 %v1544, %v1736
        %v1738 = vpop.f32.mrf.mxu0
        %v1739 = vadd.f32 %v1546, %v1738
        %v1740 = vpop.f32.mrf.mxu0
        %v1741 = vadd.f32 %v1548, %v1740
        %v1742 = vpop.f32.mrf.mxu0
        %v1743 = vadd.f32 %v1550, %v1742
        %1744 = vmatprep.mubr.bf16.mxu0 %v924
        %1745 = vmatmul.mubr.bf16.gmra.mxu0 %v923
        %v1746 = vpop.f32.mrf.mxu0
        %v1747 = vadd.f32 %v1554, %v1746
        %v1748 = vpop.f32.mrf.mxu0
        %v1749 = vadd.f32 %v1556, %v1748
        %v1750 = vpop.f32.mrf.mxu0
        %v1751 = vadd.f32 %v1558, %v1750
        %v1752 = vpop.f32.mrf.mxu0
        %v1753 = vadd.f32 %v1560, %v1752
        %1754 = vmatprep.mubr.bf16.mxu0 %v929
        %1755 = vmatmul.mubr.bf16.gmra.mxu0 %v928
        %v1756 = vpop.f32.mrf.mxu0
        %v1757 = vadd.f32 %v1564, %v1756
        %v1758 = vpop.f32.mrf.mxu0
        %v1759 = vadd.f32 %v1566, %v1758
        %v1760 = vpop.f32.mrf.mxu0
        %v1761 = vadd.f32 %v1568, %v1760
        %v1762 = vpop.f32.mrf.mxu0
        %v1763 = vadd.f32 %v1570, %v1762
        %1764 = vmatprep.mubr.bf16.mxu0 %v934
        %1765 = vmatmul.mubr.bf16.gmra.mxu0 %v933
        %v1766 = vpop.f32.mrf.mxu0
        %v1767 = vadd.f32 %v1574, %v1766
        %v1768 = vpop.f32.mrf.mxu0
        %v1769 = vadd.f32 %v1576, %v1768
        %v1770 = vpop.f32.mrf.mxu0
        %v1771 = vadd.f32 %v1578, %v1770
        %v1772 = vpop.f32.mrf.mxu0
        %v1773 = vadd.f32 %v1580, %v1772
        %1774 = vmatprep.mubr.bf16.mxu0 %v939
        %1775 = vmatmul.mubr.bf16.gmra.mxu0 %v938
        %v1776 = vpop.f32.mrf.mxu0
        %v1777 = vadd.f32 %v1584, %v1776
        %v1778 = vpop.f32.mrf.mxu0
        %v1779 = vadd.f32 %v1586, %v1778
        %v1780 = vpop.f32.mrf.mxu0
        %v1781 = vadd.f32 %v1588, %v1780
        %v1782 = vpop.f32.mrf.mxu0
        %v1783 = vadd.f32 %v1590, %v1782
        %1784 = vmatprep.mubr.bf16.mxu0 %v944
        %1785 = vmatmul.mubr.bf16.gmra.mxu0 %v943
        %v1786 = vpop.f32.mrf.mxu0
        %v1787 = vadd.f32 %v1594, %v1786
        %v1788 = vpop.f32.mrf.mxu0
        %v1789 = vadd.f32 %v1596, %v1788
        %v1790 = vpop.f32.mrf.mxu0
        %v1791 = vadd.f32 %v1598, %v1790
        %v1792 = vpop.f32.mrf.mxu0
        %v1793 = vadd.f32 %v1600, %v1792
        %1794 = vmatprep.mubr.bf16.mxu0 %v949
        %1795 = vmatmul.mubr.bf16.gmra.mxu0 %v948
        %v1796 = vpop.f32.mrf.mxu0
        %v1797 = vadd.f32 %v1604, %v1796
        %v1798 = vpop.f32.mrf.mxu0
        %v1799 = vadd.f32 %v1606, %v1798
        %v1800 = vpop.f32.mrf.mxu0
        %v1801 = vadd.f32 %v1608, %v1800
        %v1802 = vpop.f32.mrf.mxu0
        %v1803 = vadd.f32 %v1610, %v1802
        %1804 = vmatprep.mubr.bf16.mxu0 %v954
        %1805 = vmatmul.mubr.bf16.gmra.mxu0 %v953
        %v1806 = vpop.f32.mrf.mxu0
        %v1807 = vadd.f32 %v1614, %v1806
        %v1808 = vpop.f32.mrf.mxu0
        %v1809 = vadd.f32 %v1616, %v1808
        %v1810 = vpop.f32.mrf.mxu0
        %v1811 = vadd.f32 %v1618, %v1810
        %v1812 = vpop.f32.mrf.mxu0
        %v1813 = vadd.f32 %v1620, %v1812
        %1814 = vdwg.mxu0
        %1815 = vmatprep.subr.bf16.mxu0 0
        %1816 = vmatpush1.bf16.msra.mxu0 0
        %1817 = vmatprep.subr.bf16.mxu0 0
        %1818 = vmatpush1.bf16.msra.mxu0 0
        %1819 = vmatprep.subr.bf16.mxu0 0
        %1820 = vmatpush1.bf16.msra.mxu0 0
        %1821 = vmatprep.subr.bf16.mxu0 0
        %1822 = vmatpush1.bf16.msra.mxu0 0
        %1823 = vmatprep.subr.bf16.mxu0 %v1307
        %1824 = vmatpush1.bf16.msra.mxu0 %v1306
        %1825 = vmatprep.subr.bf16.mxu0 %v1305
        %1826 = vmatpush1.bf16.msra.mxu0 %v1304
        %1827 = vmatprep.subr.bf16.mxu0 %v1303
        %1828 = vmatpush1.bf16.msra.mxu0 %v1302
        %1829 = vmatprep.subr.bf16.mxu0 %v1301
        %1830 = vmatpush1.bf16.msra.mxu0 %v1300
        %1831 = vmatprep.subr.bf16.mxu0 0
        %1832 = vmatpush2.bf16.msra.mxu0 0
        %1833 = vmatprep.subr.bf16.mxu0 0
        %1834 = vmatpush2.bf16.msra.mxu0 0
        %1835 = vmatprep.subr.bf16.mxu0 0
        %1836 = vmatpush2.bf16.msra.mxu0 0
        %1837 = vmatprep.subr.bf16.mxu0 0
        %1838 = vmatpush2.bf16.msra.mxu0 0
        %1839 = vmatprep.subr.bf16.mxu0 0
        %1840 = vmatpush2.bf16.msra.mxu0 0
        %1841 = vmatprep.subr.bf16.mxu0 0
        %1842 = vmatpush2.bf16.msra.mxu0 0
        %1843 = vmatprep.subr.bf16.mxu0 0
        %1844 = vmatpush2.bf16.msra.mxu0 0
        %1845 = vmatprep.subr.bf16.mxu0 0
        %1846 = vmatpush2.bf16.msra.mxu0 0
        %1847 = vmatprep.mubr.bf16.mxu0 0
        %1848 = vmatmul.mubr.bf16.gmra.mxu0 %v1382
        %v1849 = vpop.f32.mrf.mxu0
        %v1850 = vadd.f32 %v1657, %v1849
        %v1851 = vpop.f32.mrf.mxu0
        %v1852 = vadd.f32 %v1659, %v1851
        %v1853 = vpop.f32.mrf.mxu0
        %v1854 = vadd.f32 %v1661, %v1853
        %v1855 = vpop.f32.mrf.mxu0
        %v1856 = vadd.f32 %v1663, %v1855
        %1857 = vmatprep.mubr.bf16.mxu0 0
        %1858 = vmatmul.mubr.bf16.gmra.mxu0 %v1385
        %v1859 = vpop.f32.mrf.mxu0
        %v1860 = vadd.f32 %v1667, %v1859
        %v1861 = vpop.f32.mrf.mxu0
        %v1862 = vadd.f32 %v1669, %v1861
        %v1863 = vpop.f32.mrf.mxu0
        %v1864 = vadd.f32 %v1671, %v1863
        %v1865 = vpop.f32.mrf.mxu0
        %v1866 = vadd.f32 %v1673, %v1865
        %1867 = vmatprep.mubr.bf16.mxu0 0
        %1868 = vmatmul.mubr.bf16.gmra.mxu0 %v1388
        %v1869 = vpop.f32.mrf.mxu0
        %v1870 = vadd.f32 %v1677, %v1869
        %v1871 = vpop.f32.mrf.mxu0
        %v1872 = vadd.f32 %v1679, %v1871
        %v1873 = vpop.f32.mrf.mxu0
        %v1874 = vadd.f32 %v1681, %v1873
        %v1875 = vpop.f32.mrf.mxu0
        %v1876 = vadd.f32 %v1683, %v1875
        %1877 = vmatprep.mubr.bf16.mxu0 0
        %1878 = vmatmul.mubr.bf16.gmra.mxu0 %v1391
        %v1879 = vpop.f32.mrf.mxu0
        %v1880 = vadd.f32 %v1687, %v1879
        %v1881 = vpop.f32.mrf.mxu0
        %v1882 = vadd.f32 %v1689, %v1881
        %v1883 = vpop.f32.mrf.mxu0
        %v1884 = vadd.f32 %v1691, %v1883
        %v1885 = vpop.f32.mrf.mxu0
        %v1886 = vadd.f32 %v1693, %v1885
        %1887 = vmatprep.mubr.bf16.mxu0 0
        %1888 = vmatmul.mubr.bf16.gmra.mxu0 %v1394
        %v1889 = vpop.f32.mrf.mxu0
        %v1890 = vadd.f32 %v1697, %v1889
        %v1891 = vpop.f32.mrf.mxu0
        %v1892 = vadd.f32 %v1699, %v1891
        %v1893 = vpop.f32.mrf.mxu0
        %v1894 = vadd.f32 %v1701, %v1893
        %v1895 = vpop.f32.mrf.mxu0
        %v1896 = vadd.f32 %v1703, %v1895
        %1897 = vmatprep.mubr.bf16.mxu0 0
        %1898 = vmatmul.mubr.bf16.gmra.mxu0 %v1397
        %v1899 = vpop.f32.mrf.mxu0
        %v1900 = vadd.f32 %v1707, %v1899
        %v1901 = vpop.f32.mrf.mxu0
        %v1902 = vadd.f32 %v1709, %v1901
        %v1903 = vpop.f32.mrf.mxu0
        %v1904 = vadd.f32 %v1711, %v1903
        %v1905 = vpop.f32.mrf.mxu0
        %v1906 = vadd.f32 %v1713, %v1905
        %1907 = vmatprep.mubr.bf16.mxu0 0
        %1908 = vmatmul.mubr.bf16.gmra.mxu0 %v1400
        %v1909 = vpop.f32.mrf.mxu0
        %v1910 = vadd.f32 %v1717, %v1909
        %v1911 = vpop.f32.mrf.mxu0
        %v1912 = vadd.f32 %v1719, %v1911
        %v1913 = vpop.f32.mrf.mxu0
        %v1914 = vadd.f32 %v1721, %v1913
        %v1915 = vpop.f32.mrf.mxu0
        %v1916 = vadd.f32 %v1723, %v1915
        %1917 = vmatprep.mubr.bf16.mxu0 0
        %1918 = vmatmul.mubr.bf16.gmra.mxu0 %v1403
        %v1919 = vpop.f32.mrf.mxu0
        %v1920 = vadd.f32 %v1727, %v1919
        %v1921 = vpop.f32.mrf.mxu0
        %v1922 = vadd.f32 %v1729, %v1921
        %v1923 = vpop.f32.mrf.mxu0
        %v1924 = vadd.f32 %v1731, %v1923
        %v1925 = vpop.f32.mrf.mxu0
        %v1926 = vadd.f32 %v1733, %v1925
        %1927 = vmatprep.mubr.bf16.mxu0 0
        %1928 = vmatmul.mubr.bf16.gmra.mxu0 %v1406
        %v1929 = vpop.f32.mrf.mxu0
        %v1930 = vadd.f32 %v1737, %v1929
        %v1931 = vpop.f32.mrf.mxu0
        %v1932 = vadd.f32 %v1739, %v1931
        %v1933 = vpop.f32.mrf.mxu0
        %v1934 = vadd.f32 %v1741, %v1933
        %v1935 = vpop.f32.mrf.mxu0
        %v1936 = vadd.f32 %v1743, %v1935
        %1937 = vmatprep.mubr.bf16.mxu0 0
        %1938 = vmatmul.mubr.bf16.gmra.mxu0 %v1409
        %v1939 = vpop.f32.mrf.mxu0
        %v1940 = vadd.f32 %v1747, %v1939
        %v1941 = vpop.f32.mrf.mxu0
        %v1942 = vadd.f32 %v1749, %v1941
        %v1943 = vpop.f32.mrf.mxu0
        %v1944 = vadd.f32 %v1751, %v1943
        %v1945 = vpop.f32.mrf.mxu0
        %v1946 = vadd.f32 %v1753, %v1945
        %1947 = vmatprep.mubr.bf16.mxu0 0
        %1948 = vmatmul.mubr.bf16.gmra.mxu0 %v1412
        %v1949 = vpop.f32.mrf.mxu0
        %v1950 = vadd.f32 %v1757, %v1949
        %v1951 = vpop.f32.mrf.mxu0
        %v1952 = vadd.f32 %v1759, %v1951
        %v1953 = vpop.f32.mrf.mxu0
        %v1954 = vadd.f32 %v1761, %v1953
        %v1955 = vpop.f32.mrf.mxu0
        %v1956 = vadd.f32 %v1763, %v1955
        %1957 = vmatprep.mubr.bf16.mxu0 0
        %1958 = vmatmul.mubr.bf16.gmra.mxu0 %v1415
        %v1959 = vpop.f32.mrf.mxu0
        %v1960 = vadd.f32 %v1767, %v1959
        %v1961 = vpop.f32.mrf.mxu0
        %v1962 = vadd.f32 %v1769, %v1961
        %v1963 = vpop.f32.mrf.mxu0
        %v1964 = vadd.f32 %v1771, %v1963
        %v1965 = vpop.f32.mrf.mxu0
        %v1966 = vadd.f32 %v1773, %v1965
        %1967 = vmatprep.mubr.bf16.mxu0 0
        %1968 = vmatmul.mubr.bf16.gmra.mxu0 %v1418
        %v1969 = vpop.f32.mrf.mxu0
        %v1970 = vadd.f32 %v1777, %v1969
        %v1971 = vpop.f32.mrf.mxu0
        %v1972 = vadd.f32 %v1779, %v1971
        %v1973 = vpop.f32.mrf.mxu0
        %v1974 = vadd.f32 %v1781, %v1973
        %v1975 = vpop.f32.mrf.mxu0
        %v1976 = vadd.f32 %v1783, %v1975
        %1977 = vmatprep.mubr.bf16.mxu0 0
        %1978 = vmatmul.mubr.bf16.gmra.mxu0 %v1421
        %v1979 = vpop.f32.mrf.mxu0
        %v1980 = vadd.f32 %v1787, %v1979
        %v1981 = vpop.f32.mrf.mxu0
        %v1982 = vadd.f32 %v1789, %v1981
        %v1983 = vpop.f32.mrf.mxu0
        %v1984 = vadd.f32 %v1791, %v1983
        %v1985 = vpop.f32.mrf.mxu0
        %v1986 = vadd.f32 %v1793, %v1985
        %1987 = vmatprep.mubr.bf16.mxu0 0
        %1988 = vmatmul.mubr.bf16.gmra.mxu0 %v1424
        %v1989 = vpop.f32.mrf.mxu0
        %v1990 = vadd.f32 %v1797, %v1989
        %v1991 = vpop.f32.mrf.mxu0
        %v1992 = vadd.f32 %v1799, %v1991
        %v1993 = vpop.f32.mrf.mxu0
        %v1994 = vadd.f32 %v1801, %v1993
        %v1995 = vpop.f32.mrf.mxu0
        %v1996 = vadd.f32 %v1803, %v1995
        %1997 = vmatprep.mubr.bf16.mxu0 0
        %1998 = vmatmul.mubr.bf16.gmra.mxu0 %v1427
        %v1999 = vpop.f32.mrf.mxu0
        %v2000 = vadd.f32 %v1807, %v1999
        %v2001 = vpop.f32.mrf.mxu0
        %v2002 = vadd.f32 %v1809, %v2001
        %v2003 = vpop.f32.mrf.mxu0
        %v2004 = vadd.f32 %v1811, %v2003
        %v2005 = vpop.f32.mrf.mxu0
        %v2006 = vadd.f32 %v1813, %v2005
        %2007 = vdwg.mxu0
        %v2008 = vadd.f32 %v388, %v1850
        %v2009 = vadd.f32 %v389, %v1852
        %v2010 = vadd.f32 %v390, %v1854
        %v2011 = vadd.f32 %v391, %v1856
        %v2012 = vadd.f32 %v392, %v1860
        %v2013 = vadd.f32 %v393, %v1862
        %v2014 = vadd.f32 %v394, %v1864
        %v2015 = vadd.f32 %v395, %v1866
        %v2016 = vadd.f32 %v396, %v1870
        %v2017 = vadd.f32 %v397, %v1872
        %v2018 = vadd.f32 %v398, %v1874
        %v2019 = vadd.f32 %v399, %v1876
        %v2020 = vadd.f32 %v400, %v1880
        %v2021 = vadd.f32 %v401, %v1882
        %v2022 = vadd.f32 %v402, %v1884
        %v2023 = vadd.f32 %v403, %v1886
        %v2024 = vadd.f32 %v404, %v1890
        %v2025 = vadd.f32 %v405, %v1892
        %v2026 = vadd.f32 %v406, %v1894
        %v2027 = vadd.f32 %v407, %v1896
        %v2028 = vadd.f32 %v408, %v1900
        %v2029 = vadd.f32 %v409, %v1902
        %v2030 = vadd.f32 %v410, %v1904
        %v2031 = vadd.f32 %v411, %v1906
        %v2032 = vadd.f32 %v412, %v1910
        %v2033 = vadd.f32 %v413, %v1912
        %v2034 = vadd.f32 %v414, %v1914
        %v2035 = vadd.f32 %v415, %v1916
        %v2036 = vadd.f32 %v416, %v1920
        %v2037 = vadd.f32 %v417, %v1922
        %v2038 = vadd.f32 %v418, %v1924
        %v2039 = vadd.f32 %v419, %v1926
        %v2040 = vadd.f32 %v420, %v1930
        %v2041 = vadd.f32 %v421, %v1932
        %v2042 = vadd.f32 %v422, %v1934
        %v2043 = vadd.f32 %v423, %v1936
        %v2044 = vadd.f32 %v424, %v1940
        %v2045 = vadd.f32 %v425, %v1942
        %v2046 = vadd.f32 %v426, %v1944
        %v2047 = vadd.f32 %v427, %v1946
        %v2048 = vadd.f32 %v428, %v1950
        %v2049 = vadd.f32 %v429, %v1952
        %v2050 = vadd.f32 %v430, %v1954
        %v2051 = vadd.f32 %v431, %v1956
        %v2052 = vadd.f32 %v432, %v1960
        %v2053 = vadd.f32 %v433, %v1962
        %v2054 = vadd.f32 %v434, %v1964
        %v2055 = vadd.f32 %v435, %v1966
        %v2056 = vadd.f32 %v436, %v1970
        %v2057 = vadd.f32 %v437, %v1972
        %v2058 = vadd.f32 %v438, %v1974
        %v2059 = vadd.f32 %v439, %v1976
        %v2060 = vadd.f32 %v440, %v1980
        %v2061 = vadd.f32 %v441, %v1982
        %v2062 = vadd.f32 %v442, %v1984
        %v2063 = vadd.f32 %v443, %v1986
        %v2064 = vadd.f32 %v444, %v1990
        %v2065 = vadd.f32 %v445, %v1992
        %v2066 = vadd.f32 %v446, %v1994
        %v2067 = vadd.f32 %v447, %v1996
        %v2068 = vadd.f32 %v448, %v2000
        %v2069 = vadd.f32 %v449, %v2002
        %v2070 = vadd.f32 %v450, %v2004
        %v2071 = vadd.f32 %v451, %v2006
        %2072 = vst [vmem:[#allocation2] sm:$0xff] %v2008
        %2073 = vst [vmem:[#allocation2 + $0x8] sm:$0xff] %v2009
        %2074 = vst [vmem:[#allocation2 + $0x10] sm:$0xff] %v2010
        %2075 = vst [vmem:[#allocation2 + $0x18] sm:$0xff] %v2011
        %2076 = vst [vmem:[#allocation2 + $0x20] sm:$0xff] %v2012
        %2077 = vst [vmem:[#allocation2 + $0x28] sm:$0xff] %v2013
        %2078 = vst [vmem:[#allocation2 + $0x30] sm:$0xff] %v2014
        %2079 = vst [vmem:[#allocation2 + $0x38] sm:$0xff] %v2015
        %2080 = vst [vmem:[#allocation2 + $0x40] sm:$0xff] %v2016
        %2081 = vst [vmem:[#allocation2 + $0x48] sm:$0xff] %v2017
        %2082 = vst [vmem:[#allocation2 + $0x50] sm:$0xff] %v2018
        %2083 = vst [vmem:[#allocation2 + $0x58] sm:$0xff] %v2019
        %2084 = vst [vmem:[#allocation2 + $0x60] sm:$0xff] %v2020
        %2085 = vst [vmem:[#allocation2 + $0x68] sm:$0xff] %v2021
        %2086 = vst [vmem:[#allocation2 + $0x70] sm:$0xff] %v2022
        %2087 = vst [vmem:[#allocation2 + $0x78] sm:$0xff] %v2023
        %2088 = vst [vmem:[#allocation2 + $0x80] sm:$0xff] %v2024
        %2089 = vst [vmem:[#allocation2 + $0x88] sm:$0xff] %v2025
        %2090 = vst [vmem:[#allocation2 + $0x90] sm:$0xff] %v2026
        %2091 = vst [vmem:[#allocation2 + $0x98] sm:$0xff] %v2027
        %2092 = vst [vmem:[#allocation2 + $0xa0] sm:$0xff] %v2028
        %2093 = vst [vmem:[#allocation2 + $0xa8] sm:$0xff] %v2029
        %2094 = vst [vmem:[#allocation2 + $0xb0] sm:$0xff] %v2030
        %2095 = vst [vmem:[#allocation2 + $0xb8] sm:$0xff] %v2031
        %2096 = vst [vmem:[#allocation2 + $0xc0] sm:$0xff] %v2032
        %2097 = vst [vmem:[#allocation2 + $0xc8] sm:$0xff] %v2033
        %2098 = vst [vmem:[#allocation2 + $0xd0] sm:$0xff] %v2034
        %2099 = vst [vmem:[#allocation2 + $0xd8] sm:$0xff] %v2035
        %2100 = vst [vmem:[#allocation2 + $0xe0] sm:$0xff] %v2036
        %2101 = vst [vmem:[#allocation2 + $0xe8] sm:$0xff] %v2037
        %2102 = vst [vmem:[#allocation2 + $0xf0] sm:$0xff] %v2038
        %2103 = vst [vmem:[#allocation2 + $0xf8] sm:$0xff] %v2039
        %2104 = vst [vmem:[#allocation2 + $0x100] sm:$0xff] %v2040
        %2105 = vst [vmem:[#allocation2 + $0x108] sm:$0xff] %v2041
        %2106 = vst [vmem:[#allocation2 + $0x110] sm:$0xff] %v2042
        %2107 = vst [vmem:[#allocation2 + $0x118] sm:$0xff] %v2043
        %2108 = vst [vmem:[#allocation2 + $0x120] sm:$0xff] %v2044
        %2109 = vst [vmem:[#allocation2 + $0x128] sm:$0xff] %v2045
        %2110 = vst [vmem:[#allocation2 + $0x130] sm:$0xff] %v2046
        %2111 = vst [vmem:[#allocation2 + $0x138] sm:$0xff] %v2047
        %2112 = vst [vmem:[#allocation2 + $0x140] sm:$0xff] %v2048
        %2113 = vst [vmem:[#allocation2 + $0x148] sm:$0xff] %v2049
        %2114 = vst [vmem:[#allocation2 + $0x150] sm:$0xff] %v2050
        %2115 = vst [vmem:[#allocation2 + $0x158] sm:$0xff] %v2051
        %2116 = vst [vmem:[#allocation2 + $0x160] sm:$0xff] %v2052
        %2117 = vst [vmem:[#allocation2 + $0x168] sm:$0xff] %v2053
        %2118 = vst [vmem:[#allocation2 + $0x170] sm:$0xff] %v2054
        %2119 = vst [vmem:[#allocation2 + $0x178] sm:$0xff] %v2055
        %2120 = vst [vmem:[#allocation2 + $0x180] sm:$0xff] %v2056
        %2121 = vst [vmem:[#allocation2 + $0x188] sm:$0xff] %v2057
        %2122 = vst [vmem:[#allocation2 + $0x190] sm:$0xff] %v2058
        %2123 = vst [vmem:[#allocation2 + $0x198] sm:$0xff] %v2059
        %2124 = vst [vmem:[#allocation2 + $0x1a0] sm:$0xff] %v2060
        %2125 = vst [vmem:[#allocation2 + $0x1a8] sm:$0xff] %v2061
        %2126 = vst [vmem:[#allocation2 + $0x1b0] sm:$0xff] %v2062
        %2127 = vst [vmem:[#allocation2 + $0x1b8] sm:$0xff] %v2063
        %2128 = vst [vmem:[#allocation2 + $0x1c0] sm:$0xff] %v2064
        %2129 = vst [vmem:[#allocation2 + $0x1c8] sm:$0xff] %v2065
        %2130 = vst [vmem:[#allocation2 + $0x1d0] sm:$0xff] %v2066
        %2131 = vst [vmem:[#allocation2 + $0x1d8] sm:$0xff] %v2067
        %2132 = vst [vmem:[#allocation2 + $0x1e0] sm:$0xff] %v2068
        %2133 = vst [vmem:[#allocation2 + $0x1e8] sm:$0xff] %v2069
        %2134 = vst [vmem:[#allocation2 + $0x1f0] sm:$0xff] %v2070
        %2135 = vst [vmem:[#allocation2 + $0x1f8] sm:$0xff] %v2071
        // Predicated region
        $region41: #{tpu_custom_call.1} parent=35 // pred_check
          %p2136 = pneg %p320
        $region42: #{tpu_custom_call.1} parent=35 // pred_check_branch
          %2138 = sbr.rel (%p2136) target = $region44
        $region43: #{tpu_custom_call.1} parent=35 // pred_region
          %v2139 = vld [vmem:[#allocation2] sm:$0xff]
          %v2140 = vld [vmem:[#allocation2 + $0x8] sm:$0xff]
          %v2141 = vld [vmem:[#allocation2 + $0x10] sm:$0xff]
          %v2142 = vld [vmem:[#allocation2 + $0x18] sm:$0xff]
          %v2143 = vld [vmem:[#allocation2 + $0x20] sm:$0xff]
          %v2144 = vld [vmem:[#allocation2 + $0x28] sm:$0xff]
          %v2145 = vld [vmem:[#allocation2 + $0x30] sm:$0xff]
          %v2146 = vld [vmem:[#allocation2 + $0x38] sm:$0xff]
          %v2147 = vld [vmem:[#allocation2 + $0x40] sm:$0xff]
          %v2148 = vld [vmem:[#allocation2 + $0x48] sm:$0xff]
          %v2149 = vld [vmem:[#allocation2 + $0x50] sm:$0xff]
          %v2150 = vld [vmem:[#allocation2 + $0x58] sm:$0xff]
          %v2151 = vld [vmem:[#allocation2 + $0x60] sm:$0xff]
          %v2152 = vld [vmem:[#allocation2 + $0x68] sm:$0xff]
          %v2153 = vld [vmem:[#allocation2 + $0x70] sm:$0xff]
          %v2154 = vld [vmem:[#allocation2 + $0x78] sm:$0xff]
          %v2155 = vld [vmem:[#allocation2 + $0x80] sm:$0xff]
          %v2156 = vld [vmem:[#allocation2 + $0x88] sm:$0xff]
          %v2157 = vld [vmem:[#allocation2 + $0x90] sm:$0xff]
          %v2158 = vld [vmem:[#allocation2 + $0x98] sm:$0xff]
          %v2159 = vld [vmem:[#allocation2 + $0xa0] sm:$0xff]
          %v2160 = vld [vmem:[#allocation2 + $0xa8] sm:$0xff]
          %v2161 = vld [vmem:[#allocation2 + $0xb0] sm:$0xff]
          %v2162 = vld [vmem:[#allocation2 + $0xb8] sm:$0xff]
          %v2163 = vld [vmem:[#allocation2 + $0xc0] sm:$0xff]
          %v2164 = vld [vmem:[#allocation2 + $0xc8] sm:$0xff]
          %v2165 = vld [vmem:[#allocation2 + $0xd0] sm:$0xff]
          %v2166 = vld [vmem:[#allocation2 + $0xd8] sm:$0xff]
          %v2167 = vld [vmem:[#allocation2 + $0xe0] sm:$0xff]
          %v2168 = vld [vmem:[#allocation2 + $0xe8] sm:$0xff]
          %v2169 = vld [vmem:[#allocation2 + $0xf0] sm:$0xff]
          %v2170 = vld [vmem:[#allocation2 + $0xf8] sm:$0xff]
          %v2171 = vld [vmem:[#allocation2 + $0x100] sm:$0xff]
          %v2172 = vld [vmem:[#allocation2 + $0x108] sm:$0xff]
          %v2173 = vld [vmem:[#allocation2 + $0x110] sm:$0xff]
          %v2174 = vld [vmem:[#allocation2 + $0x118] sm:$0xff]
          %v2175 = vld [vmem:[#allocation2 + $0x120] sm:$0xff]
          %v2176 = vld [vmem:[#allocation2 + $0x128] sm:$0xff]
          %v2177 = vld [vmem:[#allocation2 + $0x130] sm:$0xff]
          %v2178 = vld [vmem:[#allocation2 + $0x138] sm:$0xff]
          %v2179 = vld [vmem:[#allocation2 + $0x140] sm:$0xff]
          %v2180 = vld [vmem:[#allocation2 + $0x148] sm:$0xff]
          %v2181 = vld [vmem:[#allocation2 + $0x150] sm:$0xff]
          %v2182 = vld [vmem:[#allocation2 + $0x158] sm:$0xff]
          %v2183 = vld [vmem:[#allocation2 + $0x160] sm:$0xff]
          %v2184 = vld [vmem:[#allocation2 + $0x168] sm:$0xff]
          %v2185 = vld [vmem:[#allocation2 + $0x170] sm:$0xff]
          %v2186 = vld [vmem:[#allocation2 + $0x178] sm:$0xff]
          %v2187 = vld [vmem:[#allocation2 + $0x180] sm:$0xff]
          %v2188 = vld [vmem:[#allocation2 + $0x188] sm:$0xff]
          %v2189 = vld [vmem:[#allocation2 + $0x190] sm:$0xff]
          %v2190 = vld [vmem:[#allocation2 + $0x198] sm:$0xff]
          %v2191 = vld [vmem:[#allocation2 + $0x1a0] sm:$0xff]
          %v2192 = vld [vmem:[#allocation2 + $0x1a8] sm:$0xff]
          %v2193 = vld [vmem:[#allocation2 + $0x1b0] sm:$0xff]
          %v2194 = vld [vmem:[#allocation2 + $0x1b8] sm:$0xff]
          %v2195 = vld [vmem:[#allocation2 + $0x1c0] sm:$0xff]
          %v2196 = vld [vmem:[#allocation2 + $0x1c8] sm:$0xff]
          %v2197 = vld [vmem:[#allocation2 + $0x1d0] sm:$0xff]
          %v2198 = vld [vmem:[#allocation2 + $0x1d8] sm:$0xff]
          %v2199 = vld [vmem:[#allocation2 + $0x1e0] sm:$0xff]
          %v2200 = vld [vmem:[#allocation2 + $0x1e8] sm:$0xff]
          %v2201 = vld [vmem:[#allocation2 + $0x1f0] sm:$0xff]
          %v2202 = vld [vmem:[#allocation2 + $0x1f8] sm:$0xff]
          %v2203 = vld [vmem:[%s2] sm:$0x3]
          %v2205 = vlaneseq
          %v2206 = vshrl.u32 %v2205, 7
          %v2207 = vsub.s32 0, %v2206
          %v2208 = vrot.slane %v2203, %v2207
          %v2209 = vlaneseq
          %v2210 = vshrl.u32 %v2209, 7
          %v2211 = vsub.s32 1, %v2210
          %v2212 = vrot.slane %v2203, %v2211
          %v2215 = vmul.f32 %v2139, %v2208
          %v2216 = vmul.f32 %v2140, %v2212
          %v2217 = vmul.f32 %v2141, %v2208
          %v2218 = vmul.f32 %v2142, %v2212
          %v2219 = vmul.f32 %v2143, %v2208
          %v2220 = vmul.f32 %v2144, %v2212
          %v2221 = vmul.f32 %v2145, %v2208
          %v2222 = vmul.f32 %v2146, %v2212
          %v2223 = vmul.f32 %v2147, %v2208
          %v2224 = vmul.f32 %v2148, %v2212
          %v2225 = vmul.f32 %v2149, %v2208
          %v2226 = vmul.f32 %v2150, %v2212
          %v2227 = vmul.f32 %v2151, %v2208
          %v2228 = vmul.f32 %v2152, %v2212
          %v2229 = vmul.f32 %v2153, %v2208
          %v2230 = vmul.f32 %v2154, %v2212
          %v2231 = vmul.f32 %v2155, %v2208
          %v2232 = vmul.f32 %v2156, %v2212
          %v2233 = vmul.f32 %v2157, %v2208
          %v2234 = vmul.f32 %v2158, %v2212
          %v2235 = vmul.f32 %v2159, %v2208
          %v2236 = vmul.f32 %v2160, %v2212
          %v2237 = vmul.f32 %v2161, %v2208
          %v2238 = vmul.f32 %v2162, %v2212
          %v2239 = vmul.f32 %v2163, %v2208
          %v2240 = vmul.f32 %v2164, %v2212
          %v2241 = vmul.f32 %v2165, %v2208
          %v2242 = vmul.f32 %v2166, %v2212
          %v2243 = vmul.f32 %v2167, %v2208
          %v2244 = vmul.f32 %v2168, %v2212
          %v2245 = vmul.f32 %v2169, %v2208
          %v2246 = vmul.f32 %v2170, %v2212
          %v2247 = vmul.f32 %v2171, %v2208
          %v2248 = vmul.f32 %v2172, %v2212
          %v2249 = vmul.f32 %v2173, %v2208
          %v2250 = vmul.f32 %v2174, %v2212
          %v2251 = vmul.f32 %v2175, %v2208
          %v2252 = vmul.f32 %v2176, %v2212
          %v2253 = vmul.f32 %v2177, %v2208
          %v2254 = vmul.f32 %v2178, %v2212
          %v2255 = vmul.f32 %v2179, %v2208
          %v2256 = vmul.f32 %v2180, %v2212
          %v2257 = vmul.f32 %v2181, %v2208
          %v2258 = vmul.f32 %v2182, %v2212
          %v2259 = vmul.f32 %v2183, %v2208
          %v2260 = vmul.f32 %v2184, %v2212
          %v2261 = vmul.f32 %v2185, %v2208
          %v2262 = vmul.f32 %v2186, %v2212
          %v2263 = vmul.f32 %v2187, %v2208
          %v2264 = vmul.f32 %v2188, %v2212
          %v2265 = vmul.f32 %v2189, %v2208
          %v2266 = vmul.f32 %v2190, %v2212
          %v2267 = vmul.f32 %v2191, %v2208
          %v2268 = vmul.f32 %v2192, %v2212
          %v2269 = vmul.f32 %v2193, %v2208
          %v2270 = vmul.f32 %v2194, %v2212
          %v2271 = vmul.f32 %v2195, %v2208
          %v2272 = vmul.f32 %v2196, %v2212
          %v2273 = vmul.f32 %v2197, %v2208
          %v2274 = vmul.f32 %v2198, %v2212
          %v2275 = vmul.f32 %v2199, %v2208
          %v2276 = vmul.f32 %v2200, %v2212
          %v2277 = vmul.f32 %v2201, %v2208
          %v2278 = vmul.f32 %v2202, %v2212
          %v2279 = vld [vmem:[%s3] sm:$0x3]
          %v2281 = vlaneseq
          %v2282 = vshrl.u32 %v2281, 7
          %v2283 = vsub.s32 0, %v2282
          %v2284 = vrot.slane %v2279, %v2283
          %v2285 = vlaneseq
          %v2286 = vshrl.u32 %v2285, 7
          %v2287 = vsub.s32 1, %v2286
          %v2288 = vrot.slane %v2279, %v2287
          %v2291 = vadd.f32 %v2215, %v2284
          %v2292 = vadd.f32 %v2216, %v2288
          %v2293 = vadd.f32 %v2217, %v2284
          %v2294 = vadd.f32 %v2218, %v2288
          %v2295 = vadd.f32 %v2219, %v2284
          %v2296 = vadd.f32 %v2220, %v2288
          %v2297 = vadd.f32 %v2221, %v2284
          %v2298 = vadd.f32 %v2222, %v2288
          %v2299 = vadd.f32 %v2223, %v2284
          %v2300 = vadd.f32 %v2224, %v2288
          %v2301 = vadd.f32 %v2225, %v2284
          %v2302 = vadd.f32 %v2226, %v2288
          %v2303 = vadd.f32 %v2227, %v2284
          %v2304 = vadd.f32 %v2228, %v2288
          %v2305 = vadd.f32 %v2229, %v2284
          %v2306 = vadd.f32 %v2230, %v2288
          %v2307 = vadd.f32 %v2231, %v2284
          %v2308 = vadd.f32 %v2232, %v2288
          %v2309 = vadd.f32 %v2233, %v2284
          %v2310 = vadd.f32 %v2234, %v2288
          %v2311 = vadd.f32 %v2235, %v2284
          %v2312 = vadd.f32 %v2236, %v2288
          %v2313 = vadd.f32 %v2237, %v2284
          %v2314 = vadd.f32 %v2238, %v2288
          %v2315 = vadd.f32 %v2239, %v2284
          %v2316 = vadd.f32 %v2240, %v2288
          %v2317 = vadd.f32 %v2241, %v2284
          %v2318 = vadd.f32 %v2242, %v2288
          %v2319 = vadd.f32 %v2243, %v2284
          %v2320 = vadd.f32 %v2244, %v2288
          %v2321 = vadd.f32 %v2245, %v2284
          %v2322 = vadd.f32 %v2246, %v2288
          %v2323 = vadd.f32 %v2247, %v2284
          %v2324 = vadd.f32 %v2248, %v2288
          %v2325 = vadd.f32 %v2249, %v2284
          %v2326 = vadd.f32 %v2250, %v2288
          %v2327 = vadd.f32 %v2251, %v2284
          %v2328 = vadd.f32 %v2252, %v2288
          %v2329 = vadd.f32 %v2253, %v2284
          %v2330 = vadd.f32 %v2254, %v2288
          %v2331 = vadd.f32 %v2255, %v2284
          %v2332 = vadd.f32 %v2256, %v2288
          %v2333 = vadd.f32 %v2257, %v2284
          %v2334 = vadd.f32 %v2258, %v2288
          %v2335 = vadd.f32 %v2259, %v2284
          %v2336 = vadd.f32 %v2260, %v2288
          %v2337 = vadd.f32 %v2261, %v2284
          %v2338 = vadd.f32 %v2262, %v2288
          %v2339 = vadd.f32 %v2263, %v2284
          %v2340 = vadd.f32 %v2264, %v2288
          %v2341 = vadd.f32 %v2265, %v2284
          %v2342 = vadd.f32 %v2266, %v2288
          %v2343 = vadd.f32 %v2267, %v2284
          %v2344 = vadd.f32 %v2268, %v2288
          %v2345 = vadd.f32 %v2269, %v2284
          %v2346 = vadd.f32 %v2270, %v2288
          %v2347 = vadd.f32 %v2271, %v2284
          %v2348 = vadd.f32 %v2272, %v2288
          %v2349 = vadd.f32 %v2273, %v2284
          %v2350 = vadd.f32 %v2274, %v2288
          %v2351 = vadd.f32 %v2275, %v2284
          %v2352 = vadd.f32 %v2276, %v2288
          %v2353 = vadd.f32 %v2277, %v2284
          %v2354 = vadd.f32 %v2278, %v2288
          %v2355 = vmax.f32 %v2291, 0.0
          %v2356 = vmax.f32 %v2292, 0.0
          %v2357 = vmax.f32 %v2293, 0.0
          %v2358 = vmax.f32 %v2294, 0.0
          %v2359 = vmax.f32 %v2295, 0.0
          %v2360 = vmax.f32 %v2296, 0.0
          %v2361 = vmax.f32 %v2297, 0.0
          %v2362 = vmax.f32 %v2298, 0.0
          %v2363 = vmax.f32 %v2299, 0.0
          %v2364 = vmax.f32 %v2300, 0.0
          %v2365 = vmax.f32 %v2301, 0.0
          %v2366 = vmax.f32 %v2302, 0.0
          %v2367 = vmax.f32 %v2303, 0.0
          %v2368 = vmax.f32 %v2304, 0.0
          %v2369 = vmax.f32 %v2305, 0.0
          %v2370 = vmax.f32 %v2306, 0.0
          %v2371 = vmax.f32 %v2307, 0.0
          %v2372 = vmax.f32 %v2308, 0.0
          %v2373 = vmax.f32 %v2309, 0.0
          %v2374 = vmax.f32 %v2310, 0.0
          %v2375 = vmax.f32 %v2311, 0.0
          %v2376 = vmax.f32 %v2312, 0.0
          %v2377 = vmax.f32 %v2313, 0.0
          %v2378 = vmax.f32 %v2314, 0.0
          %v2379 = vmax.f32 %v2315, 0.0
          %v2380 = vmax.f32 %v2316, 0.0
          %v2381 = vmax.f32 %v2317, 0.0
          %v2382 = vmax.f32 %v2318, 0.0
          %v2383 = vmax.f32 %v2319, 0.0
          %v2384 = vmax.f32 %v2320, 0.0
          %v2385 = vmax.f32 %v2321, 0.0
          %v2386 = vmax.f32 %v2322, 0.0
          %v2387 = vmax.f32 %v2323, 0.0
          %v2388 = vmax.f32 %v2324, 0.0
          %v2389 = vmax.f32 %v2325, 0.0
          %v2390 = vmax.f32 %v2326, 0.0
          %v2391 = vmax.f32 %v2327, 0.0
          %v2392 = vmax.f32 %v2328, 0.0
          %v2393 = vmax.f32 %v2329, 0.0
          %v2394 = vmax.f32 %v2330, 0.0
          %v2395 = vmax.f32 %v2331, 0.0
          %v2396 = vmax.f32 %v2332, 0.0
          %v2397 = vmax.f32 %v2333, 0.0
          %v2398 = vmax.f32 %v2334, 0.0
          %v2399 = vmax.f32 %v2335, 0.0
          %v2400 = vmax.f32 %v2336, 0.0
          %v2401 = vmax.f32 %v2337, 0.0
          %v2402 = vmax.f32 %v2338, 0.0
          %v2403 = vmax.f32 %v2339, 0.0
          %v2404 = vmax.f32 %v2340, 0.0
          %v2405 = vmax.f32 %v2341, 0.0
          %v2406 = vmax.f32 %v2342, 0.0
          %v2407 = vmax.f32 %v2343, 0.0
          %v2408 = vmax.f32 %v2344, 0.0
          %v2409 = vmax.f32 %v2345, 0.0
          %v2410 = vmax.f32 %v2346, 0.0
          %v2411 = vmax.f32 %v2347, 0.0
          %v2412 = vmax.f32 %v2348, 0.0
          %v2413 = vmax.f32 %v2349, 0.0
          %v2414 = vmax.f32 %v2350, 0.0
          %v2415 = vmax.f32 %v2351, 0.0
          %v2416 = vmax.f32 %v2352, 0.0
          %v2417 = vmax.f32 %v2353, 0.0
          %v2418 = vmax.f32 %v2354, 0.0
          %v2419 = vpack.c.bf16 %v2357, %v2355
          %v2420 = vpack.c.bf16 %v2361, %v2359
          %v2421 = vpack.c.bf16 %v2365, %v2363
          %v2422 = vpack.c.bf16 %v2369, %v2367
          %v2423 = vpack.c.bf16 %v2373, %v2371
          %v2424 = vpack.c.bf16 %v2377, %v2375
          %v2425 = vpack.c.bf16 %v2381, %v2379
          %v2426 = vpack.c.bf16 %v2385, %v2383
          %v2427 = vpack.c.bf16 %v2389, %v2387
          %v2428 = vpack.c.bf16 %v2393, %v2391
          %v2429 = vpack.c.bf16 %v2397, %v2395
          %v2430 = vpack.c.bf16 %v2401, %v2399
          %v2431 = vpack.c.bf16 %v2405, %v2403
          %v2432 = vpack.c.bf16 %v2409, %v2407
          %v2433 = vpack.c.bf16 %v2413, %v2411
          %v2434 = vpack.c.bf16 %v2417, %v2415
          %v2451 = vunpack.c.l.b16 %v2419
          %v2452 = vunpack.c.h.b16 %v2419
          %v2453 = vunpack.c.l.b16 %v2420
          %v2454 = vunpack.c.h.b16 %v2420
          %v2455 = vunpack.c.l.b16 %v2421
          %v2456 = vunpack.c.h.b16 %v2421
          %v2457 = vunpack.c.l.b16 %v2422
          %v2458 = vunpack.c.h.b16 %v2422
          %v2459 = vunpack.c.l.b16 %v2423
          %v2460 = vunpack.c.h.b16 %v2423
          %v2461 = vunpack.c.l.b16 %v2424
          %v2462 = vunpack.c.h.b16 %v2424
          %v2463 = vunpack.c.l.b16 %v2425
          %v2464 = vunpack.c.h.b16 %v2425
          %v2465 = vunpack.c.l.b16 %v2426
          %v2466 = vunpack.c.h.b16 %v2426
          %v2467 = vunpack.c.l.b16 %v2427
          %v2468 = vunpack.c.h.b16 %v2427
          %v2469 = vunpack.c.l.b16 %v2428
          %v2470 = vunpack.c.h.b16 %v2428
          %v2471 = vunpack.c.l.b16 %v2429
          %v2472 = vunpack.c.h.b16 %v2429
          %v2473 = vunpack.c.l.b16 %v2430
          %v2474 = vunpack.c.h.b16 %v2430
          %v2475 = vunpack.c.l.b16 %v2431
          %v2476 = vunpack.c.h.b16 %v2431
          %v2477 = vunpack.c.l.b16 %v2432
          %v2478 = vunpack.c.h.b16 %v2432
          %v2479 = vunpack.c.l.b16 %v2433
          %v2480 = vunpack.c.h.b16 %v2433
          %v2481 = vunpack.c.l.b16 %v2434
          %v2482 = vunpack.c.h.b16 %v2434
          %v2483 = vpack.c.b16 %v2451, %v2451
          %v2484 = vpack.c.b16 %v2452, %v2452
          %v2485 = vpack.c.b16 %v2453, %v2453
          %v2486 = vpack.c.b16 %v2454, %v2454
          %v2487 = vpack.c.b16 %v2455, %v2455
          %v2488 = vpack.c.b16 %v2456, %v2456
          %v2489 = vpack.c.b16 %v2457, %v2457
          %v2490 = vpack.c.b16 %v2458, %v2458
          %v2491 = vpack.c.b16 %v2459, %v2459
          %v2492 = vpack.c.b16 %v2460, %v2460
          %v2493 = vpack.c.b16 %v2461, %v2461
          %v2494 = vpack.c.b16 %v2462, %v2462
          %v2495 = vpack.c.b16 %v2463, %v2463
          %v2496 = vpack.c.b16 %v2464, %v2464
          %v2497 = vpack.c.b16 %v2465, %v2465
          %v2498 = vpack.c.b16 %v2466, %v2466
          %v2499 = vpack.c.b16 %v2467, %v2467
          %v2500 = vpack.c.b16 %v2468, %v2468
          %v2501 = vpack.c.b16 %v2469, %v2469
          %v2502 = vpack.c.b16 %v2470, %v2470
          %v2503 = vpack.c.b16 %v2471, %v2471
          %v2504 = vpack.c.b16 %v2472, %v2472
          %v2505 = vpack.c.b16 %v2473, %v2473
          %v2506 = vpack.c.b16 %v2474, %v2474
          %v2507 = vpack.c.b16 %v2475, %v2475
          %v2508 = vpack.c.b16 %v2476, %v2476
          %v2509 = vpack.c.b16 %v2477, %v2477
          %v2510 = vpack.c.b16 %v2478, %v2478
          %v2511 = vpack.c.b16 %v2479, %v2479
          %v2512 = vpack.c.b16 %v2480, %v2480
          %v2513 = vpack.c.b16 %v2481, %v2481
          %v2514 = vpack.c.b16 %v2482, %v2482
          %2547 = vst [vmem:[%s286] sm:$0xf] %v2483
          %2548 = vst [vmem:[%s286 + $0x4] sm:$0xf] %v2484
          %2549 = vst [vmem:[%s286 + $0x8] sm:$0xf] %v2485
          %2550 = vst [vmem:[%s286 + $0xc] sm:$0xf] %v2486
          %2551 = vst [vmem:[%s286 + $0x10] sm:$0xf] %v2487
          %2552 = vst [vmem:[%s286 + $0x14] sm:$0xf] %v2488
          %2553 = vst [vmem:[%s286 + $0x18] sm:$0xf] %v2489
          %2554 = vst [vmem:[%s286 + $0x1c] sm:$0xf] %v2490
          %2555 = vst [vmem:[%s286 + $0x20] sm:$0xf] %v2491
          %2556 = vst [vmem:[%s286 + $0x24] sm:$0xf] %v2492
          %2557 = vst [vmem:[%s286 + $0x28] sm:$0xf] %v2493
          %2558 = vst [vmem:[%s286 + $0x2c] sm:$0xf] %v2494
          %2559 = vst [vmem:[%s286 + $0x30] sm:$0xf] %v2495
          %2560 = vst [vmem:[%s286 + $0x34] sm:$0xf] %v2496
          %2561 = vst [vmem:[%s286 + $0x38] sm:$0xf] %v2497
          %2562 = vst [vmem:[%s286 + $0x3c] sm:$0xf] %v2498
          %2563 = vst [vmem:[%s286 + $0x40] sm:$0xf] %v2499
          %2564 = vst [vmem:[%s286 + $0x44] sm:$0xf] %v2500
          %2565 = vst [vmem:[%s286 + $0x48] sm:$0xf] %v2501
          %2566 = vst [vmem:[%s286 + $0x4c] sm:$0xf] %v2502
          %2567 = vst [vmem:[%s286 + $0x50] sm:$0xf] %v2503
          %2568 = vst [vmem:[%s286 + $0x54] sm:$0xf] %v2504
          %2569 = vst [vmem:[%s286 + $0x58] sm:$0xf] %v2505
          %2570 = vst [vmem:[%s286 + $0x5c] sm:$0xf] %v2506
          %2571 = vst [vmem:[%s286 + $0x60] sm:$0xf] %v2507
          %2572 = vst [vmem:[%s286 + $0x64] sm:$0xf] %v2508
          %2573 = vst [vmem:[%s286 + $0x68] sm:$0xf] %v2509
          %2574 = vst [vmem:[%s286 + $0x6c] sm:$0xf] %v2510
          %2575 = vst [vmem:[%s286 + $0x70] sm:$0xf] %v2511
          %2576 = vst [vmem:[%s286 + $0x74] sm:$0xf] %v2512
          %2577 = vst [vmem:[%s286 + $0x78] sm:$0xf] %v2513
          %2578 = vst [vmem:[%s286 + $0x7c] sm:$0xf] %v2514
          %v2579 = vpack.c.bf16 %v2358, %v2356
          %v2580 = vpack.c.bf16 %v2362, %v2360
          %v2581 = vpack.c.bf16 %v2366, %v2364
          %v2582 = vpack.c.bf16 %v2370, %v2368
          %v2583 = vpack.c.bf16 %v2374, %v2372
          %v2584 = vpack.c.bf16 %v2378, %v2376
          %v2585 = vpack.c.bf16 %v2382, %v2380
          %v2586 = vpack.c.bf16 %v2386, %v2384
          %v2587 = vpack.c.bf16 %v2390, %v2388
          %v2588 = vpack.c.bf16 %v2394, %v2392
          %v2589 = vpack.c.bf16 %v2398, %v2396
          %v2590 = vpack.c.bf16 %v2402, %v2400
          %v2591 = vpack.c.bf16 %v2406, %v2404
          %v2592 = vpack.c.bf16 %v2410, %v2408
          %v2593 = vpack.c.bf16 %v2414, %v2412
          %v2594 = vpack.c.bf16 %v2418, %v2416
          %v2611 = vunpack.c.l.b16 %v2579
          %v2612 = vunpack.c.h.b16 %v2579
          %v2613 = vunpack.c.l.b16 %v2580
          %v2614 = vunpack.c.h.b16 %v2580
          %v2615 = vunpack.c.l.b16 %v2581
          %v2616 = vunpack.c.h.b16 %v2581
          %v2617 = vunpack.c.l.b16 %v2582
          %v2618 = vunpack.c.h.b16 %v2582
          %v2619 = vunpack.c.l.b16 %v2583
          %v2620 = vunpack.c.h.b16 %v2583
          %v2621 = vunpack.c.l.b16 %v2584
          %v2622 = vunpack.c.h.b16 %v2584
          %v2623 = vunpack.c.l.b16 %v2585
          %v2624 = vunpack.c.h.b16 %v2585
          %v2625 = vunpack.c.l.b16 %v2586
          %v2626 = vunpack.c.h.b16 %v2586
          %v2627 = vunpack.c.l.b16 %v2587
          %v2628 = vunpack.c.h.b16 %v2587
          %v2629 = vunpack.c.l.b16 %v2588
          %v2630 = vunpack.c.h.b16 %v2588
          %v2631 = vunpack.c.l.b16 %v2589
          %v2632 = vunpack.c.h.b16 %v2589
          %v2633 = vunpack.c.l.b16 %v2590
          %v2634 = vunpack.c.h.b16 %v2590
          %v2635 = vunpack.c.l.b16 %v2591
          %v2636 = vunpack.c.h.b16 %v2591
          %v2637 = vunpack.c.l.b16 %v2592
          %v2638 = vunpack.c.h.b16 %v2592
          %v2639 = vunpack.c.l.b16 %v2593
          %v2640 = vunpack.c.h.b16 %v2593
          %v2641 = vunpack.c.l.b16 %v2594
          %v2642 = vunpack.c.h.b16 %v2594
          %v2643 = vpack.c.b16 %v2611, %v2611
          %v2644 = vpack.c.b16 %v2612, %v2612
          %v2645 = vpack.c.b16 %v2613, %v2613
          %v2646 = vpack.c.b16 %v2614, %v2614
          %v2647 = vpack.c.b16 %v2615, %v2615
          %v2648 = vpack.c.b16 %v2616, %v2616
          %v2649 = vpack.c.b16 %v2617, %v2617
          %v2650 = vpack.c.b16 %v2618, %v2618
          %v2651 = vpack.c.b16 %v2619, %v2619
          %v2652 = vpack.c.b16 %v2620, %v2620
          %v2653 = vpack.c.b16 %v2621, %v2621
          %v2654 = vpack.c.b16 %v2622, %v2622
          %v2655 = vpack.c.b16 %v2623, %v2623
          %v2656 = vpack.c.b16 %v2624, %v2624
          %v2657 = vpack.c.b16 %v2625, %v2625
          %v2658 = vpack.c.b16 %v2626, %v2626
          %v2659 = vpack.c.b16 %v2627, %v2627
          %v2660 = vpack.c.b16 %v2628, %v2628
          %v2661 = vpack.c.b16 %v2629, %v2629
          %v2662 = vpack.c.b16 %v2630, %v2630
          %v2663 = vpack.c.b16 %v2631, %v2631
          %v2664 = vpack.c.b16 %v2632, %v2632
          %v2665 = vpack.c.b16 %v2633, %v2633
          %v2666 = vpack.c.b16 %v2634, %v2634
          %v2667 = vpack.c.b16 %v2635, %v2635
          %v2668 = vpack.c.b16 %v2636, %v2636
          %v2669 = vpack.c.b16 %v2637, %v2637
          %v2670 = vpack.c.b16 %v2638, %v2638
          %v2671 = vpack.c.b16 %v2639, %v2639
          %v2672 = vpack.c.b16 %v2640, %v2640
          %v2673 = vpack.c.b16 %v2641, %v2641
          %v2674 = vpack.c.b16 %v2642, %v2642
          %2707 = vst [vmem:[%s293] sm:$0xf] %v2643
          %2708 = vst [vmem:[%s293 + $0x4] sm:$0xf] %v2644
          %2709 = vst [vmem:[%s293 + $0x8] sm:$0xf] %v2645
          %2710 = vst [vmem:[%s293 + $0xc] sm:$0xf] %v2646
          %2711 = vst [vmem:[%s293 + $0x10] sm:$0xf] %v2647
          %2712 = vst [vmem:[%s293 + $0x14] sm:$0xf] %v2648
          %2713 = vst [vmem:[%s293 + $0x18] sm:$0xf] %v2649
          %2714 = vst [vmem:[%s293 + $0x1c] sm:$0xf] %v2650
          %2715 = vst [vmem:[%s293 + $0x20] sm:$0xf] %v2651
          %2716 = vst [vmem:[%s293 + $0x24] sm:$0xf] %v2652
          %2717 = vst [vmem:[%s293 + $0x28] sm:$0xf] %v2653
          %2718 = vst [vmem:[%s293 + $0x2c] sm:$0xf] %v2654
          %2719 = vst [vmem:[%s293 + $0x30] sm:$0xf] %v2655
          %2720 = vst [vmem:[%s293 + $0x34] sm:$0xf] %v2656
          %2721 = vst [vmem:[%s293 + $0x38] sm:$0xf] %v2657
          %2722 = vst [vmem:[%s293 + $0x3c] sm:$0xf] %v2658
          %2723 = vst [vmem:[%s293 + $0x40] sm:$0xf] %v2659
          %2724 = vst [vmem:[%s293 + $0x44] sm:$0xf] %v2660
          %2725 = vst [vmem:[%s293 + $0x48] sm:$0xf] %v2661
          %2726 = vst [vmem:[%s293 + $0x4c] sm:$0xf] %v2662
          %2727 = vst [vmem:[%s293 + $0x50] sm:$0xf] %v2663
          %2728 = vst [vmem:[%s293 + $0x54] sm:$0xf] %v2664
          %2729 = vst [vmem:[%s293 + $0x58] sm:$0xf] %v2665
          %2730 = vst [vmem:[%s293 + $0x5c] sm:$0xf] %v2666
          %2731 = vst [vmem:[%s293 + $0x60] sm:$0xf] %v2667
          %2732 = vst [vmem:[%s293 + $0x64] sm:$0xf] %v2668
          %2733 = vst [vmem:[%s293 + $0x68] sm:$0xf] %v2669
          %2734 = vst [vmem:[%s293 + $0x6c] sm:$0xf] %v2670
          %2735 = vst [vmem:[%s293 + $0x70] sm:$0xf] %v2671
          %2736 = vst [vmem:[%s293 + $0x74] sm:$0xf] %v2672
          %2737 = vst [vmem:[%s293 + $0x78] sm:$0xf] %v2673
          %2738 = vst [vmem:[%s293 + $0x7c] sm:$0xf] %v2674
        $region44: #{tpu_custom_call.1} parent=35 // pred_fallthru
          _
        %s2739 = sand.u32 %s150, 1
        %s2740 = scalar_lea.sflag [#allocation4], %s2739
        %s2741 = sand.u32 %s150, 1
        %s2742 = smul.addr %s2741, 128
        %s2743 = scalar_lea.vmem [#allocation3], %s2742
        %s2744 = sand.u32 %s178, 1
        %s2745 = scalar_lea.sflag [#allocation6], %s2744
        %s2746 = sand.u32 %s178, 1
        %s2747 = smul.addr %s2746, 128
        %s2748 = scalar_lea.vmem [#allocation5], %s2747
        // Predicated region
        $region45: #{tpu_custom_call.1} parent=35 // pred_check
          %p2749 = pneg %p160
        $region46: #{tpu_custom_call.1} parent=35 // pred_check_branch
          %2751 = sbr.rel (%p2749) target = $region48
        $region47: #{tpu_custom_call.1} parent=35 // pred_region
          %s2752 = smul.u32 32, %s29
          %s2754 = ssub.s32 2048, 2048
          %2755 = vsyncadd %s2740, %s2754
          %s2756 = smul.addr %s28, 32
          %s2757 = sadd.s32 %s2752, %s2756
          %s2758 = smul.addr %s2757, 64
          %s2759 = scalar_lea.hbm %s4, %s2758
          %s2760 = sshll.u32 %s2743, 4
          %s2761 = int_to_ptr.vmem [resolvable:$true] %s2760
          %2766 = dma.vmem_to_hbm [thread:$0]  %s2761, 2048, %s2759, %s2740, 64, 64, 4
        $region48: #{tpu_custom_call.1} parent=35 // pred_fallthru
          _
        // Predicated region
        $region49: #{tpu_custom_call.1} parent=35 // pred_check
          %p2767 = pneg %p188
        $region50: #{tpu_custom_call.1} parent=35 // pred_check_branch
          %2769 = sbr.rel (%p2767) target = $region52
        $region51: #{tpu_custom_call.1} parent=35 // pred_region
          %s2770 = smul.u32 32, %s29
          %s2772 = ssub.s32 2048, 2048
          %2773 = vsyncadd %s2745, %s2772
          %s2774 = smul.addr %s28, 32
          %s2775 = sadd.s32 %s2770, %s2774
          %s2776 = smul.addr %s2775, 64
          %s2777 = scalar_lea.hbm %s5, %s2776
          %s2778 = sshll.u32 %s2748, 4
          %s2779 = int_to_ptr.vmem [resolvable:$true] %s2778
          %2784 = dma.vmem_to_hbm [thread:$0]  %s2779, 2048, %s2777, %s2745, 64, 64, 4
        $region52: #{tpu_custom_call.1} parent=35 // pred_fallthru
          _
      $region36: #{tpu_custom_call.1} parent=5 // pred_fallthru
        _
      %p2785 = scmp.le.s32.totalorder 2, %s18
      // Predicated region
      $region53: #{tpu_custom_call.1} parent=5 // pred_check
        %p2786 = pneg %p2785
      $region54: #{tpu_custom_call.1} parent=5 // pred_check_branch
        %2788 = sbr.rel (%p2786) target = $region56
      $region55: #{tpu_custom_call.1} parent=5 // pred_region
        %s2789 = ssub.s32 %s18, 2
        // Predicated region
        $region57: #{tpu_custom_call.1} parent=55 // pred_check
          %p2790 = pneg %p166
        $region58: #{tpu_custom_call.1} parent=55 // pred_check_branch
          %2792 = sbr.rel (%p2790) target = $region60
        $region59: #{tpu_custom_call.1} parent=55 // pred_region
          %s2793 = sand.u32 %s151, 1
          %s2794 = scalar_lea.sflag [#allocation4], %s2793
          %s2795 = sand.u32 %s151, 1
          %s2796 = smul.addr %s2795, 128
          %s2797 = scalar_lea.vmem [#allocation3], %s2796
          %2798 = dma.done %s2794, 2048
        $region60: #{tpu_custom_call.1} parent=55 // pred_fallthru
          _
        // Predicated region
        $region61: #{tpu_custom_call.1} parent=55 // pred_check
          %p2799 = pneg %p194
        $region62: #{tpu_custom_call.1} parent=55 // pred_check_branch
          %2801 = sbr.rel (%p2799) target = $region64
        $region63: #{tpu_custom_call.1} parent=55 // pred_region
          %s2802 = sand.u32 %s179, 1
          %s2803 = scalar_lea.sflag [#allocation6], %s2802
          %s2804 = sand.u32 %s179, 1
          %s2805 = smul.addr %s2804, 128
          %s2806 = scalar_lea.vmem [#allocation5], %s2805
          %2807 = dma.done %s2803, 2048
        $region64: #{tpu_custom_call.1} parent=55 // pred_fallthru
          _
      $region56: #{tpu_custom_call.1} parent=5 // pred_fallthru
        _
    $region6: #{tpu_custom_call.1} parent=1 // loop_footer
      %s22 = sadd.s32 1, %s18
    $region7: #{tpu_custom_call.1} parent=1 // loop_footer_branch
      %17 = sbr.rel target = $region3
    $region8: #{tpu_custom_call.1} parent=1 // loop_exit
      _
    %2808 = vsyncpa [#allocation4], 1
    %s2809 = scalar_lea.sflag [#allocation4], 1
    %2810 = vsyncpa %s2809, 1
    %2811 = vsyncpa [#allocation6], 1
    %s2812 = scalar_lea.sflag [#allocation6], 1
    %2813 = vsyncpa %s2812, 1

</llo_original>
